<compile_context>
chip_gen: v7x
topology: tpu7x:2x2x1
jax: 0.10.0
libtpu: 0.0.40
codegen_flags: <defaults>
</compile_context>

<pallas_src>
import functools

import jax
import jax.numpy as jnp
import numpy as np
from jax.experimental import pallas as pl
from jax.experimental.pallas import tpu as pltpu

# Model hyper-parameters (from the PyTorch script)
HIDDEN_SIZE = 64
INPUT_SIZE = 27
NUM_CLASSES = 27
FC1_SIZE = 128

LANE = 128      # lane tile (last dim)
SUBLANE = 8     # f32 sublane tile (second-to-last dim)
D_PAD = 32      # input features (27) + ones column (bias) + zero pad -> 32


def _lstm_fc_kernel(x_ref, wih_ref, whh_ref, w1_ref, b1_ref, w2_ref, b2_ref,
                    out_ref, gx_scr, hs_scr, *, seq_len, batch_p, hidden):
    """Fused LSTM + FC head over the whole sequence in one invocation.

    x_ref   : (T*Bp, 32)  bf16   time-major input, ones column folds the bias
    wih_ref : (32, 4H)    bf16   input->gate weights, columns [i, o, f, g]
    whh_ref : (2H, 4H)    bf16   hidden->gate weights (rows 0:H zero; h lives
                                 in lanes H:2H of the state tile)
    w1_ref  : (2H, 128)   bf16   fc_1 weights (rows 0:H zero)
    b1_ref  : (1, 128)    f32
    w2_ref  : (128, Cp)   bf16   fc weights (padded cols)
    b2_ref  : (1, Cp)     f32
    out_ref : (T*Bp, Cp)  f32    lane-dense output slab
    gx_scr  : (T*Bp, 4H)  f32    cached input projection (bias included)
    hs_scr  : (T*Bp, 2H)  f32    all-timestep state tiles [junk | h]
    """
    H = hidden

    # (1) Input projection (+ bias via ones column) for every timestep in one
    #     big bf16 matmul with f32 accumulation.
    gx_scr[...] = jnp.dot(x_ref[...], wih_ref[...],
                          preferred_element_type=jnp.float32)

    # Lane masks, hoisted out of the unrolled loop (traced once).
    lane4 = jax.lax.broadcasted_iota(jnp.int32, (batch_p, 4 * H), 1)
    sig_mask = lane4 < 3 * H                  # lanes [i|o|f] sigmoid, [g] tanh
    lane2 = jax.lax.broadcasted_iota(jnp.int32, (batch_p, 2 * H), 1)
    lo_mask = lane2 < H                       # lower 64-lane half

    c_dup = jnp.zeros((batch_p, 2 * H), jnp.float32)    # [c | c]
    h_tile = jnp.zeros((batch_p, 2 * H), jnp.float32)   # [junk | h]

    # (2) Recurrence, fully unrolled (seq_len is small and static).  Only the
    #     bf16 h @ W_hh dot + one tanh pass + a few VPU/XLU ops per step sit
    #     on the serial chain.  W_hh is streamed from VMEM each step (no hoist).
    for t in range(seq_len):
        pre = (gx_scr[t * batch_p:(t + 1) * batch_p, :]
               + jnp.dot(h_tile.astype(jnp.bfloat16), whh_ref[...],
                         preferred_element_type=jnp.float32))
        # sigmoid via tanh identity: ONE EUP pass over the 256 gate lanes
        tnh = jnp.tanh(jnp.where(sig_mask, 0.5 * pre, pre))
        act = jnp.where(sig_mask, 0.5 * tnh + 0.5, tnh)
        tile0 = act[:, 0:2 * H]               # [i | o]
        tile1 = act[:, 2 * H:4 * H]           # [f | g]
        # c_new = i*g + f*c in the lower half; realign via XLU rolls (free slot)
        tmp = (tile0 * pltpu.roll(tile1, shift=H, axis=1)    # [i*g | o*f]
               + tile1 * c_dup)                              # [f*c | g*c]
        c_dup = jnp.where(lo_mask, tmp, pltpu.roll(tmp, shift=H, axis=1))
        h_tile = tile0 * jnp.tanh(c_dup)      # [i*tanh(c) | h] ; upper half = h
        hs_scr[t * batch_p:(t + 1) * batch_p, :] = h_tile

    # (3) Fused ReLU -> fc_1 -> ReLU -> fc over all timesteps at once.
    #     bf16 MXU operands, f32 accumulate, f32 elementwise (v5e-safe).
    #     Zero rows of w1 kill the junk lower half of each state tile.
    y = jnp.maximum(hs_scr[...], 0.0).astype(jnp.bfloat16)
    y = jnp.dot(y, w1_ref[...], preferred_element_type=jnp.float32) + b1_ref[...]
    y = jnp.maximum(y, 0.0).astype(jnp.bfloat16)
    y = jnp.dot(y, w2_ref[...], preferred_element_type=jnp.float32) + b2_ref[...]
    out_ref[...] = y.astype(out_ref.dtype)


def _pack_gate_cols(w):
    """(4H, K) PyTorch gate order [i,f,g,o] -> (K, 4H) columns [i,o,f,g]."""
    H = HIDDEN_SIZE
    wi, wf, wg, wo = w[:H], w[H:2 * H], w[2 * H:3 * H], w[3 * H:]
    return jnp.concatenate([wi, wo, wf, wg], axis=0).T


def _pack_gate_vec(b):
    H = HIDDEN_SIZE
    bi, bf_, bg, bo = b[:H], b[H:2 * H], b[2 * H:3 * H], b[3 * H:]
    return jnp.concatenate([bi, bo, bf_, bg])


def my_lstm_forward(x, params):
    """x: (B, T, INPUT_SIZE) float32 -> (B, T, NUM_CLASSES) float32."""
    B, T, D = x.shape
    H, C, F1 = HIDDEN_SIZE, NUM_CLASSES, FC1_SIZE
    Cp = LANE                                         # classes 27 -> 128 lanes
    Bp = ((B + SUBLANE - 1) // SUBLANE) * SUBLANE     # batch -> multiple of 8

    # ---- pack / pad parameters (gate columns [i,o,f,g], 4H = 256 lanes) ----
    wih_cols = _pack_gate_cols(params["w_ih"])                        # (D, 4H)
    bias = _pack_gate_vec(params["b_ih"] + params["b_hh"])            # (4H,)
    wih_aug = jnp.concatenate(
        [wih_cols, bias[None, :],
         jnp.zeros((D_PAD - D - 1, 4 * H), jnp.float32)],
        axis=0).astype(jnp.bfloat16)                                  # (32, 4H)

    whh_cols = _pack_gate_cols(params["w_hh"])                        # (H, 4H)
    # h lives in lanes [H:2H] of the state tile -> zero rows on top
    whh_pad = jnp.pad(whh_cols, ((H, 0), (0, 0))).astype(jnp.bfloat16)  # (2H,4H)

    w1 = jnp.pad(params["w_fc1"].T, ((H, 0), (0, 0))).astype(jnp.bfloat16)
    b1 = params["b_fc1"].reshape(1, F1).astype(jnp.float32)
    w2 = jnp.pad(params["w_fc"].T, ((0, 0), (0, Cp - C))).astype(jnp.bfloat16)
    b2 = jnp.pad(params["b_fc"], (0, Cp - C)).reshape(1, Cp).astype(jnp.float32)

    # ---- time-major, batch padded to sublane tile, ones column for bias ----
    # (a few KB at this size; for large B feed x via a BlockSpec index_map)
    x_tm = jnp.pad(jnp.transpose(x, (1, 0, 2)), ((0, 0), (0, Bp - B), (0, 0)))
    x_aug = jnp.concatenate(
        [x_tm, jnp.ones((T, Bp, 1), x.dtype),
         jnp.zeros((T, Bp, D_PAD - D - 1), x.dtype)], axis=-1)
    x2d = x_aug.reshape(T * Bp, D_PAD).astype(jnp.bfloat16)

    kernel = functools.partial(_lstm_fc_kernel, seq_len=T, batch_p=Bp, hidden=H)

    # Single invocation (no grid): all operands + scratch are well under
    # 1 MiB, which fits every generation's VMEM (v7x 64 MiB included).
    out = pl.pallas_call(
        kernel,
        out_shape=jax.ShapeDtypeStruct((T * Bp, Cp), jnp.float32),
        scratch_shapes=[
            pltpu.VMEM((T * Bp, 4 * H), jnp.float32),  # cached input projection
            pltpu.VMEM((T * Bp, 2 * H), jnp.float32),  # all-timestep state tiles
        ],
    )(x2d, wih_aug, whh_pad, w1, b1, w2, b2)

    out = out.reshape(T, Bp, Cp)[:, :B, :C]            # drop padding
    return jnp.transpose(out, (1, 0, 2))               # (B, T, C) batch-first


def init_params(key):
    """Deterministic init matching PyTorch default shapes / init ranges."""
    H, D, C, F1 = HIDDEN_SIZE, INPUT_SIZE, NUM_CLASSES, FC1_SIZE
    ks = jax.random.split(key, 8)
    u = lambda k, shape, bound: jax.random.uniform(
        k, shape, jnp.float32, minval=-bound, maxval=bound)
    lstm_b = 1.0 / np.sqrt(H)
    fc1_b = 1.0 / np.sqrt(H)
    fc_b = 1.0 / np.sqrt(F1)
    return {
        "w_ih": u(ks[0], (4 * H, D), lstm_b),
        "w_hh": u(ks[1], (4 * H, H), lstm_b),
        "b_ih": u(ks[2], (4 * H,), lstm_b),
        "b_hh": u(ks[3], (4 * H,), lstm_b),
        "w_fc1": u(ks[4], (F1, H), fc1_b),
        "b_fc1": u(ks[5], (F1,), fc1_b),
        "w_fc": u(ks[6], (C, F1), fc_b),
        "b_fc": u(ks[7], (F1,), fc_b)[:C] if False else u(ks[7], (C,), fc_b),
    }


def reference_forward(x, params):
    """Pure-JAX f32 reference of the PyTorch forward, for a sanity check."""
    B, T, D = x.shape
    H = HIDDEN_SIZE

    def step(carry, x_t):
        h, c = carry
        gates = x_t @ params["w_ih"].T + params["b_ih"] \
            + h @ params["w_hh"].T + params["b_hh"]
        i = jax.nn.sigmoid(gates[:, 0 * H:1 * H])
        f = jax.nn.sigmoid(gates[:, 1 * H:2 * H])
        g = jnp.tanh(gates[:, 2 * H:3 * H])
        o = jax.nn.sigmoid(gates[:, 3 * H:4 * H])
        c = f * c + i * g
        h = o * jnp.tanh(c)
        return (h, c), h

    h0 = jnp.zeros((B, H), jnp.float32)
    c0 = jnp.zeros((B, H), jnp.float32)
    _, hs = jax.lax.scan(step, (h0, c0), jnp.transpose(x, (1, 0, 2)))
    out = jnp.transpose(hs, (1, 0, 2))                      # (B, T, H)
    out = jnp.maximum(out, 0.0)
    out = out @ params["w_fc1"].T + params["b_fc1"]
    out = jnp.maximum(out, 0.0)
    out = out @ params["w_fc"].T + params["b_fc"]
    return out


if __name__ == "__main__":
    key = jax.random.PRNGKey(0)
    k_params, k_x = jax.random.split(key)

    params = init_params(k_params)

    batch, seq = 2, 8
    x = jax.random.normal(k_x, (batch, seq, INPUT_SIZE), jnp.float32)

    out = my_lstm_forward(x, params)
    out = jax.block_until_ready(out)

    ref = jax.block_until_ready(reference_forward(x, params))
    # bf16 MXU operands (by design, per perf review) -> loose-ish tolerance
    np.testing.assert_allclose(np.asarray(out), np.asarray(ref),
                               rtol=2e-2, atol=2e-2)
    assert out.shape == (batch, seq, NUM_CLASSES)
    print("KERNEL_OK")
</pallas_src>

<mosaic_0001>
module attributes {stable_mosaic.version = 11 : i64} {
  func.func @_lstm_fc_kernel(%arg0: memref<64x32xbf16, #tpu.memory_space<vmem>>, %arg1: memref<32x256xbf16, #tpu.memory_space<vmem>>, %arg2: memref<128x256xbf16, #tpu.memory_space<vmem>>, %arg3: memref<128x128xbf16, #tpu.memory_space<vmem>>, %arg4: memref<1x128xf32, #tpu.memory_space<vmem>>, %arg5: memref<128x128xbf16, #tpu.memory_space<vmem>>, %arg6: memref<1x128xf32, #tpu.memory_space<vmem>>, %arg7: memref<64x128xf32, #tpu.memory_space<vmem>>, %arg8: memref<64x256xf32, #tpu.memory_space<vmem>>, %arg9: memref<64x128xf32, #tpu.memory_space<vmem>>) attributes {dimension_semantics = [], scalar_prefetch = 0 : i64, scratch_operands = 2 : i64, tpu.core_type = #tpu.core_type<tc>} {
    %c0 = arith.constant 0 : index
    %c0_0 = arith.constant 0 : index
    %0 = vector.load %arg0[%c0, %c0_0] : memref<64x32xbf16, #tpu.memory_space<vmem>>, vector<64x32xbf16>
    %c0_1 = arith.constant 0 : index
    %c0_2 = arith.constant 0 : index
    %1 = vector.load %arg1[%c0_1, %c0_2] : memref<32x256xbf16, #tpu.memory_space<vmem>>, vector<32x256xbf16>
    %cst = arith.constant dense<0.000000e+00> : vector<64x256xf32>
    %2 = tpu.matmul %0, %1, %cst {dimension_numbers = #tpu.dot_dimension_numbers<[1], [0], [0], [1], [0, 0, 1, 1], [], []>} : vector<64x32xbf16>, vector<32x256xbf16>, vector<64x256xf32> -> vector<64x256xf32>
    %c0_3 = arith.constant 0 : index
    %c0_4 = arith.constant 0 : index
    %3 = vector.load %arg8[%c0_3, %c0_4] : memref<64x256xf32, #tpu.memory_space<vmem>>, vector<64x256xf32>
    tpu.vector_store %arg8[%c0_3, %c0_4], %2 {strides = array<i32>} : memref<64x256xf32, #tpu.memory_space<vmem>>, vector<64x256xf32>,
    %4 = tpu.iota {dimensions = array<i32: 1>} : vector<8x256xi32>
    %c192_i32 = arith.constant 192 : i32
    %5 = vector.broadcast %c192_i32 : i32 to vector<8x256xi32>
    %6 = arith.cmpi slt, %4, %5 : vector<8x256xi32>
    %7 = tpu.iota {dimensions = array<i32: 1>} : vector<8x128xi32>
    %c64_i32 = arith.constant 64 : i32
    %8 = vector.broadcast %c64_i32 : i32 to vector<8x128xi32>
    %9 = arith.cmpi slt, %7, %8 : vector<8x128xi32>
    %cst_5 = arith.constant 0.000000e+00 : f32
    %10 = vector.broadcast %cst_5 : f32 to vector<8x128xf32>
    %cst_6 = arith.constant 0.000000e+00 : f32
    %11 = vector.broadcast %cst_6 : f32 to vector<8x128xf32>
    %c0_7 = arith.constant 0 : index
    %c0_8 = arith.constant 0 : index
    %12 = vector.load %arg8[%c0_7, %c0_8] : memref<64x256xf32, #tpu.memory_space<vmem>>, vector<8x256xf32>
    %13 = arith.truncf %11 : vector<8x128xf32> to vector<8x128xbf16>
    %c0_9 = arith.constant 0 : index
    %c0_10 = arith.constant 0 : index
    %14 = vector.load %arg2[%c0_9, %c0_10] : memref<128x256xbf16, #tpu.memory_space<vmem>>, vector<128x256xbf16>
    %cst_11 = arith.constant dense<0.000000e+00> : vector<8x256xf32>
    %15 = tpu.matmul %13, %14, %cst_11 {dimension_numbers = #tpu.dot_dimension_numbers<[1], [0], [0], [1], [0, 0, 1, 1], [], []>} : vector<8x128xbf16>, vector<128x256xbf16>, vector<8x256xf32> -> vector<8x256xf32>
    %16 = arith.addf %12, %15 : vector<8x256xf32>
    %cst_12 = arith.constant 5.000000e-01 : f32
    %17 = vector.broadcast %cst_12 : f32 to vector<8x256xf32>
    %18 = arith.mulf %17, %16 : vector<8x256xf32>
    %19 = arith.select %6, %18, %16 : vector<8x256xi1>, vector<8x256xf32>
    %20 = math.tanh %19 : vector<8x256xf32>
    %cst_13 = arith.constant 5.000000e-01 : f32
    %21 = vector.broadcast %cst_13 : f32 to vector<8x256xf32>
    %22 = arith.mulf %21, %20 : vector<8x256xf32>
    %cst_14 = arith.constant 5.000000e-01 : f32
    %23 = vector.broadcast %cst_14 : f32 to vector<8x256xf32>
    %24 = arith.addf %22, %23 : vector<8x256xf32>
    %25 = arith.select %6, %24, %20 : vector<8x256xi1>, vector<8x256xf32>
    %26 = vector.extract_strided_slice %25 {offsets = [0, 0], sizes = [8, 128], strides = [1, 1]} : vector<8x256xf32> to vector<8x128xf32>
    %27 = vector.extract_strided_slice %25 {offsets = [0, 128], sizes = [8, 128], strides = [1, 1]} : vector<8x256xf32> to vector<8x128xf32>
    %c64_i32_15 = arith.constant 64 : i32
    %28 = tpu.dynamic_rotate %27 by %c64_i32_15 dim 1 : vector<8x128xf32>, i32 -> vector<8x128xf32>
    %29 = arith.mulf %26, %28 : vector<8x128xf32>
    %30 = arith.mulf %27, %10 : vector<8x128xf32>
    %31 = arith.addf %29, %30 : vector<8x128xf32>
    %c64_i32_16 = arith.constant 64 : i32
    %32 = tpu.dynamic_rotate %31 by %c64_i32_16 dim 1 : vector<8x128xf32>, i32 -> vector<8x128xf32>
    %33 = arith.select %9, %31, %32 : vector<8x128xi1>, vector<8x128xf32>
    %34 = math.tanh %33 : vector<8x128xf32>
    %35 = arith.mulf %26, %34 : vector<8x128xf32>
    %c0_17 = arith.constant 0 : index
    %c0_18 = arith.constant 0 : index
    %36 = vector.load %arg9[%c0_17, %c0_18] : memref<64x128xf32, #tpu.memory_space<vmem>>, vector<8x128xf32>
    tpu.vector_store %arg9[%c0_17, %c0_18], %35 {strides = array<i32>} : memref<64x128xf32, #tpu.memory_space<vmem>>, vector<8x128xf32>,
    %c8 = arith.constant 8 : index
    %c0_19 = arith.constant 0 : index
    %37 = vector.load %arg8[%c8, %c0_19] : memref<64x256xf32, #tpu.memory_space<vmem>>, vector<8x256xf32>
    %38 = arith.truncf %35 : vector<8x128xf32> to vector<8x128xbf16>
    %c0_20 = arith.constant 0 : index
    %c0_21 = arith.constant 0 : index
    %39 = vector.load %arg2[%c0_20, %c0_21] : memref<128x256xbf16, #tpu.memory_space<vmem>>, vector<128x256xbf16>
    %cst_22 = arith.constant dense<0.000000e+00> : vector<8x256xf32>
    %40 = tpu.matmul %38, %39, %cst_22 {dimension_numbers = #tpu.dot_dimension_numbers<[1], [0], [0], [1], [0, 0, 1, 1], [], []>} : vector<8x128xbf16>, vector<128x256xbf16>, vector<8x256xf32> -> vector<8x256xf32>
    %41 = arith.addf %37, %40 : vector<8x256xf32>
    %cst_23 = arith.constant 5.000000e-01 : f32
    %42 = vector.broadcast %cst_23 : f32 to vector<8x256xf32>
    %43 = arith.mulf %42, %41 : vector<8x256xf32>
    %44 = arith.select %6, %43, %41 : vector<8x256xi1>, vector<8x256xf32>
    %45 = math.tanh %44 : vector<8x256xf32>
    %cst_24 = arith.constant 5.000000e-01 : f32
    %46 = vector.broadcast %cst_24 : f32 to vector<8x256xf32>
    %47 = arith.mulf %46, %45 : vector<8x256xf32>
    %cst_25 = arith.constant 5.000000e-01 : f32
    %48 = vector.broadcast %cst_25 : f32 to vector<8x256xf32>
    %49 = arith.addf %47, %48 : vector<8x256xf32>
    %50 = arith.select %6, %49, %45 : vector<8x256xi1>, vector<8x256xf32>
    %51 = vector.extract_strided_slice %50 {offsets = [0, 0], sizes = [8, 128], strides = [1, 1]} : vector<8x256xf32> to vector<8x128xf32>
    %52 = vector.extract_strided_slice %50 {offsets = [0, 128], sizes = [8, 128], strides = [1, 1]} : vector<8x256xf32> to vector<8x128xf32>
    %c64_i32_26 = arith.constant 64 : i32
    %53 = tpu.dynamic_rotate %52 by %c64_i32_26 dim 1 : vector<8x128xf32>, i32 -> vector<8x128xf32>
    %54 = arith.mulf %51, %53 : vector<8x128xf32>
    %55 = arith.mulf %52, %33 : vector<8x128xf32>
    %56 = arith.addf %54, %55 : vector<8x128xf32>
    %c64_i32_27 = arith.constant 64 : i32
    %57 = tpu.dynamic_rotate %56 by %c64_i32_27 dim 1 : vector<8x128xf32>, i32 -> vector<8x128xf32>
    %58 = arith.select %9, %56, %57 : vector<8x128xi1>, vector<8x128xf32>
    %59 = math.tanh %58 : vector<8x128xf32>
    %60 = arith.mulf %51, %59 : vector<8x128xf32>
    %c8_28 = arith.constant 8 : index
    %c0_29 = arith.constant 0 : index
    %61 = vector.load %arg9[%c8_28, %c0_29] : memref<64x128xf32, #tpu.memory_space<vmem>>, vector<8x128xf32>
    tpu.vector_store %arg9[%c8_28, %c0_29], %60 {strides = array<i32>} : memref<64x128xf32, #tpu.memory_space<vmem>>, vector<8x128xf32>,
    %c16 = arith.constant 16 : index
    %c0_30 = arith.constant 0 : index
    %62 = vector.load %arg8[%c16, %c0_30] : memref<64x256xf32, #tpu.memory_space<vmem>>, vector<8x256xf32>
    %63 = arith.truncf %60 : vector<8x128xf32> to vector<8x128xbf16>
    %c0_31 = arith.constant 0 : index
    %c0_32 = arith.constant 0 : index
    %64 = vector.load %arg2[%c0_31, %c0_32] : memref<128x256xbf16, #tpu.memory_space<vmem>>, vector<128x256xbf16>
    %cst_33 = arith.constant dense<0.000000e+00> : vector<8x256xf32>
    %65 = tpu.matmul %63, %64, %cst_33 {dimension_numbers = #tpu.dot_dimension_numbers<[1], [0], [0], [1], [0, 0, 1, 1], [], []>} : vector<8x128xbf16>, vector<128x256xbf16>, vector<8x256xf32> -> vector<8x256xf32>
    %66 = arith.addf %62, %65 : vector<8x256xf32>
    %cst_34 = arith.constant 5.000000e-01 : f32
    %67 = vector.broadcast %cst_34 : f32 to vector<8x256xf32>
    %68 = arith.mulf %67, %66 : vector<8x256xf32>
    %69 = arith.select %6, %68, %66 : vector<8x256xi1>, vector<8x256xf32>
    %70 = math.tanh %69 : vector<8x256xf32>
    %cst_35 = arith.constant 5.000000e-01 : f32
    %71 = vector.broadcast %cst_35 : f32 to vector<8x256xf32>
    %72 = arith.mulf %71, %70 : vector<8x256xf32>
    %cst_36 = arith.constant 5.000000e-01 : f32
    %73 = vector.broadcast %cst_36 : f32 to vector<8x256xf32>
    %74 = arith.addf %72, %73 : vector<8x256xf32>
    %75 = arith.select %6, %74, %70 : vector<8x256xi1>, vector<8x256xf32>
    %76 = vector.extract_strided_slice %75 {offsets = [0, 0], sizes = [8, 128], strides = [1, 1]} : vector<8x256xf32> to vector<8x128xf32>
    %77 = vector.extract_strided_slice %75 {offsets = [0, 128], sizes = [8, 128], strides = [1, 1]} : vector<8x256xf32> to vector<8x128xf32>
    %c64_i32_37 = arith.constant 64 : i32
    %78 = tpu.dynamic_rotate %77 by %c64_i32_37 dim 1 : vector<8x128xf32>, i32 -> vector<8x128xf32>
    %79 = arith.mulf %76, %78 : vector<8x128xf32>
    %80 = arith.mulf %77, %58 : vector<8x128xf32>
    %81 = arith.addf %79, %80 : vector<8x128xf32>
    %c64_i32_38 = arith.constant 64 : i32
    %82 = tpu.dynamic_rotate %81 by %c64_i32_38 dim 1 : vector<8x128xf32>, i32 -> vector<8x128xf32>
    %83 = arith.select %9, %81, %82 : vector<8x128xi1>, vector<8x128xf32>
    %84 = math.tanh %83 : vector<8x128xf32>
    %85 = arith.mulf %76, %84 : vector<8x128xf32>
    %c16_39 = arith.constant 16 : index
    %c0_40 = arith.constant 0 : index
    %86 = vector.load %arg9[%c16_39, %c0_40] : memref<64x128xf32, #tpu.memory_space<vmem>>, vector<8x128xf32>
    tpu.vector_store %arg9[%c16_39, %c0_40], %85 {strides = array<i32>} : memref<64x128xf32, #tpu.memory_space<vmem>>, vector<8x128xf32>,
    %c24 = arith.constant 24 : index
    %c0_41 = arith.constant 0 : index
    %87 = vector.load %arg8[%c24, %c0_41] : memref<64x256xf32, #tpu.memory_space<vmem>>, vector<8x256xf32>
    %88 = arith.truncf %85 : vector<8x128xf32> to vector<8x128xbf16>
    %c0_42 = arith.constant 0 : index
    %c0_43 = arith.constant 0 : index
    %89 = vector.load %arg2[%c0_42, %c0_43] : memref<128x256xbf16, #tpu.memory_space<vmem>>, vector<128x256xbf16>
    %cst_44 = arith.constant dense<0.000000e+00> : vector<8x256xf32>
    %90 = tpu.matmul %88, %89, %cst_44 {dimension_numbers = #tpu.dot_dimension_numbers<[1], [0], [0], [1], [0, 0, 1, 1], [], []>} : vector<8x128xbf16>, vector<128x256xbf16>, vector<8x256xf32> -> vector<8x256xf32>
    %91 = arith.addf %87, %90 : vector<8x256xf32>
    %cst_45 = arith.constant 5.000000e-01 : f32
    %92 = vector.broadcast %cst_45 : f32 to vector<8x256xf32>
    %93 = arith.mulf %92, %91 : vector<8x256xf32>
    %94 = arith.select %6, %93, %91 : vector<8x256xi1>, vector<8x256xf32>
    %95 = math.tanh %94 : vector<8x256xf32>
    %cst_46 = arith.constant 5.000000e-01 : f32
    %96 = vector.broadcast %cst_46 : f32 to vector<8x256xf32>
    %97 = arith.mulf %96, %95 : vector<8x256xf32>
    %cst_47 = arith.constant 5.000000e-01 : f32
    %98 = vector.broadcast %cst_47 : f32 to vector<8x256xf32>
    %99 = arith.addf %97, %98 : vector<8x256xf32>
    %100 = arith.select %6, %99, %95 : vector<8x256xi1>, vector<8x256xf32>
    %101 = vector.extract_strided_slice %100 {offsets = [0, 0], sizes = [8, 128], strides = [1, 1]} : vector<8x256xf32> to vector<8x128xf32>
    %102 = vector.extract_strided_slice %100 {offsets = [0, 128], sizes = [8, 128], strides = [1, 1]} : vector<8x256xf32> to vector<8x128xf32>
    %c64_i32_48 = arith.constant 64 : i32
    %103 = tpu.dynamic_rotate %102 by %c64_i32_48 dim 1 : vector<8x128xf32>, i32 -> vector<8x128xf32>
    %104 = arith.mulf %101, %103 : vector<8x128xf32>
    %105 = arith.mulf %102, %83 : vector<8x128xf32>
    %106 = arith.addf %104, %105 : vector<8x128xf32>
    %c64_i32_49 = arith.constant 64 : i32
    %107 = tpu.dynamic_rotate %106 by %c64_i32_49 dim 1 : vector<8x128xf32>, i32 -> vector<8x128xf32>
    %108 = arith.select %9, %106, %107 : vector<8x128xi1>, vector<8x128xf32>
    %109 = math.tanh %108 : vector<8x128xf32>
    %110 = arith.mulf %101, %109 : vector<8x128xf32>
    %c24_50 = arith.constant 24 : index
    %c0_51 = arith.constant 0 : index
    %111 = vector.load %arg9[%c24_50, %c0_51] : memref<64x128xf32, #tpu.memory_space<vmem>>, vector<8x128xf32>
    tpu.vector_store %arg9[%c24_50, %c0_51], %110 {strides = array<i32>} : memref<64x128xf32, #tpu.memory_space<vmem>>, vector<8x128xf32>,
    %c32 = arith.constant 32 : index
    %c0_52 = arith.constant 0 : index
    %112 = vector.load %arg8[%c32, %c0_52] : memref<64x256xf32, #tpu.memory_space<vmem>>, vector<8x256xf32>
    %113 = arith.truncf %110 : vector<8x128xf32> to vector<8x128xbf16>
    %c0_53 = arith.constant 0 : index
    %c0_54 = arith.constant 0 : index
    %114 = vector.load %arg2[%c0_53, %c0_54] : memref<128x256xbf16, #tpu.memory_space<vmem>>, vector<128x256xbf16>
    %cst_55 = arith.constant dense<0.000000e+00> : vector<8x256xf32>
    %115 = tpu.matmul %113, %114, %cst_55 {dimension_numbers = #tpu.dot_dimension_numbers<[1], [0], [0], [1], [0, 0, 1, 1], [], []>} : vector<8x128xbf16>, vector<128x256xbf16>, vector<8x256xf32> -> vector<8x256xf32>
    %116 = arith.addf %112, %115 : vector<8x256xf32>
    %cst_56 = arith.constant 5.000000e-01 : f32
    %117 = vector.broadcast %cst_56 : f32 to vector<8x256xf32>
    %118 = arith.mulf %117, %116 : vector<8x256xf32>
    %119 = arith.select %6, %118, %116 : vector<8x256xi1>, vector<8x256xf32>
    %120 = math.tanh %119 : vector<8x256xf32>
    %cst_57 = arith.constant 5.000000e-01 : f32
    %121 = vector.broadcast %cst_57 : f32 to vector<8x256xf32>
    %122 = arith.mulf %121, %120 : vector<8x256xf32>
    %cst_58 = arith.constant 5.000000e-01 : f32
    %123 = vector.broadcast %cst_58 : f32 to vector<8x256xf32>
    %124 = arith.addf %122, %123 : vector<8x256xf32>
    %125 = arith.select %6, %124, %120 : vector<8x256xi1>, vector<8x256xf32>
    %126 = vector.extract_strided_slice %125 {offsets = [0, 0], sizes = [8, 128], strides = [1, 1]} : vector<8x256xf32> to vector<8x128xf32>
    %127 = vector.extract_strided_slice %125 {offsets = [0, 128], sizes = [8, 128], strides = [1, 1]} : vector<8x256xf32> to vector<8x128xf32>
    %c64_i32_59 = arith.constant 64 : i32
    %128 = tpu.dynamic_rotate %127 by %c64_i32_59 dim 1 : vector<8x128xf32>, i32 -> vector<8x128xf32>
    %129 = arith.mulf %126, %128 : vector<8x128xf32>
    %130 = arith.mulf %127, %108 : vector<8x128xf32>
    %131 = arith.addf %129, %130 : vector<8x128xf32>
    %c64_i32_60 = arith.constant 64 : i32
    %132 = tpu.dynamic_rotate %131 by %c64_i32_60 dim 1 : vector<8x128xf32>, i32 -> vector<8x128xf32>
    %133 = arith.select %9, %131, %132 : vector<8x128xi1>, vector<8x128xf32>
    %134 = math.tanh %133 : vector<8x128xf32>
    %135 = arith.mulf %126, %134 : vector<8x128xf32>
    %c32_61 = arith.constant 32 : index
    %c0_62 = arith.constant 0 : index
    %136 = vector.load %arg9[%c32_61, %c0_62] : memref<64x128xf32, #tpu.memory_space<vmem>>, vector<8x128xf32>
    tpu.vector_store %arg9[%c32_61, %c0_62], %135 {strides = array<i32>} : memref<64x128xf32, #tpu.memory_space<vmem>>, vector<8x128xf32>,
    %c40 = arith.constant 40 : index
    %c0_63 = arith.constant 0 : index
    %137 = vector.load %arg8[%c40, %c0_63] : memref<64x256xf32, #tpu.memory_space<vmem>>, vector<8x256xf32>
    %138 = arith.truncf %135 : vector<8x128xf32> to vector<8x128xbf16>
    %c0_64 = arith.constant 0 : index
    %c0_65 = arith.constant 0 : index
    %139 = vector.load %arg2[%c0_64, %c0_65] : memref<128x256xbf16, #tpu.memory_space<vmem>>, vector<128x256xbf16>
    %cst_66 = arith.constant dense<0.000000e+00> : vector<8x256xf32>
    %140 = tpu.matmul %138, %139, %cst_66 {dimension_numbers = #tpu.dot_dimension_numbers<[1], [0], [0], [1], [0, 0, 1, 1], [], []>} : vector<8x128xbf16>, vector<128x256xbf16>, vector<8x256xf32> -> vector<8x256xf32>
    %141 = arith.addf %137, %140 : vector<8x256xf32>
    %cst_67 = arith.constant 5.000000e-01 : f32
    %142 = vector.broadcast %cst_67 : f32 to vector<8x256xf32>
    %143 = arith.mulf %142, %141 : vector<8x256xf32>
    %144 = arith.select %6, %143, %141 : vector<8x256xi1>, vector<8x256xf32>
    %145 = math.tanh %144 : vector<8x256xf32>
    %cst_68 = arith.constant 5.000000e-01 : f32
    %146 = vector.broadcast %cst_68 : f32 to vector<8x256xf32>
    %147 = arith.mulf %146, %145 : vector<8x256xf32>
    %cst_69 = arith.constant 5.000000e-01 : f32
    %148 = vector.broadcast %cst_69 : f32 to vector<8x256xf32>
    %149 = arith.addf %147, %148 : vector<8x256xf32>
    %150 = arith.select %6, %149, %145 : vector<8x256xi1>, vector<8x256xf32>
    %151 = vector.extract_strided_slice %150 {offsets = [0, 0], sizes = [8, 128], strides = [1, 1]} : vector<8x256xf32> to vector<8x128xf32>
    %152 = vector.extract_strided_slice %150 {offsets = [0, 128], sizes = [8, 128], strides = [1, 1]} : vector<8x256xf32> to vector<8x128xf32>
    %c64_i32_70 = arith.constant 64 : i32
    %153 = tpu.dynamic_rotate %152 by %c64_i32_70 dim 1 : vector<8x128xf32>, i32 -> vector<8x128xf32>
    %154 = arith.mulf %151, %153 : vector<8x128xf32>
    %155 = arith.mulf %152, %133 : vector<8x128xf32>
    %156 = arith.addf %154, %155 : vector<8x128xf32>
    %c64_i32_71 = arith.constant 64 : i32
    %157 = tpu.dynamic_rotate %156 by %c64_i32_71 dim 1 : vector<8x128xf32>, i32 -> vector<8x128xf32>
    %158 = arith.select %9, %156, %157 : vector<8x128xi1>, vector<8x128xf32>
    %159 = math.tanh %158 : vector<8x128xf32>
    %160 = arith.mulf %151, %159 : vector<8x128xf32>
    %c40_72 = arith.constant 40 : index
    %c0_73 = arith.constant 0 : index
    %161 = vector.load %arg9[%c40_72, %c0_73] : memref<64x128xf32, #tpu.memory_space<vmem>>, vector<8x128xf32>
    tpu.vector_store %arg9[%c40_72, %c0_73], %160 {strides = array<i32>} : memref<64x128xf32, #tpu.memory_space<vmem>>, vector<8x128xf32>,
    %c48 = arith.constant 48 : index
    %c0_74 = arith.constant 0 : index
    %162 = vector.load %arg8[%c48, %c0_74] : memref<64x256xf32, #tpu.memory_space<vmem>>, vector<8x256xf32>
    %163 = arith.truncf %160 : vector<8x128xf32> to vector<8x128xbf16>
    %c0_75 = arith.constant 0 : index
    %c0_76 = arith.constant 0 : index
    %164 = vector.load %arg2[%c0_75, %c0_76] : memref<128x256xbf16, #tpu.memory_space<vmem>>, vector<128x256xbf16>
    %cst_77 = arith.constant dense<0.000000e+00> : vector<8x256xf32>
    %165 = tpu.matmul %163, %164, %cst_77 {dimension_numbers = #tpu.dot_dimension_numbers<[1], [0], [0], [1], [0, 0, 1, 1], [], []>} : vector<8x128xbf16>, vector<128x256xbf16>, vector<8x256xf32> -> vector<8x256xf32>
    %166 = arith.addf %162, %165 : vector<8x256xf32>
    %cst_78 = arith.constant 5.000000e-01 : f32
    %167 = vector.broadcast %cst_78 : f32 to vector<8x256xf32>
    %168 = arith.mulf %167, %166 : vector<8x256xf32>
    %169 = arith.select %6, %168, %166 : vector<8x256xi1>, vector<8x256xf32>
    %170 = math.tanh %169 : vector<8x256xf32>
    %cst_79 = arith.constant 5.000000e-01 : f32
    %171 = vector.broadcast %cst_79 : f32 to vector<8x256xf32>
    %172 = arith.mulf %171, %170 : vector<8x256xf32>
    %cst_80 = arith.constant 5.000000e-01 : f32
    %173 = vector.broadcast %cst_80 : f32 to vector<8x256xf32>
    %174 = arith.addf %172, %173 : vector<8x256xf32>
    %175 = arith.select %6, %174, %170 : vector<8x256xi1>, vector<8x256xf32>
    %176 = vector.extract_strided_slice %175 {offsets = [0, 0], sizes = [8, 128], strides = [1, 1]} : vector<8x256xf32> to vector<8x128xf32>
    %177 = vector.extract_strided_slice %175 {offsets = [0, 128], sizes = [8, 128], strides = [1, 1]} : vector<8x256xf32> to vector<8x128xf32>
    %c64_i32_81 = arith.constant 64 : i32
    %178 = tpu.dynamic_rotate %177 by %c64_i32_81 dim 1 : vector<8x128xf32>, i32 -> vector<8x128xf32>
    %179 = arith.mulf %176, %178 : vector<8x128xf32>
    %180 = arith.mulf %177, %158 : vector<8x128xf32>
    %181 = arith.addf %179, %180 : vector<8x128xf32>
    %c64_i32_82 = arith.constant 64 : i32
    %182 = tpu.dynamic_rotate %181 by %c64_i32_82 dim 1 : vector<8x128xf32>, i32 -> vector<8x128xf32>
    %183 = arith.select %9, %181, %182 : vector<8x128xi1>, vector<8x128xf32>
    %184 = math.tanh %183 : vector<8x128xf32>
    %185 = arith.mulf %176, %184 : vector<8x128xf32>
    %c48_83 = arith.constant 48 : index
    %c0_84 = arith.constant 0 : index
    %186 = vector.load %arg9[%c48_83, %c0_84] : memref<64x128xf32, #tpu.memory_space<vmem>>, vector<8x128xf32>
    tpu.vector_store %arg9[%c48_83, %c0_84], %185 {strides = array<i32>} : memref<64x128xf32, #tpu.memory_space<vmem>>, vector<8x128xf32>,
    %c56 = arith.constant 56 : index
    %c0_85 = arith.constant 0 : index
    %187 = vector.load %arg8[%c56, %c0_85] : memref<64x256xf32, #tpu.memory_space<vmem>>, vector<8x256xf32>
    %188 = arith.truncf %185 : vector<8x128xf32> to vector<8x128xbf16>
    %c0_86 = arith.constant 0 : index
    %c0_87 = arith.constant 0 : index
    %189 = vector.load %arg2[%c0_86, %c0_87] : memref<128x256xbf16, #tpu.memory_space<vmem>>, vector<128x256xbf16>
    %cst_88 = arith.constant dense<0.000000e+00> : vector<8x256xf32>
    %190 = tpu.matmul %188, %189, %cst_88 {dimension_numbers = #tpu.dot_dimension_numbers<[1], [0], [0], [1], [0, 0, 1, 1], [], []>} : vector<8x128xbf16>, vector<128x256xbf16>, vector<8x256xf32> -> vector<8x256xf32>
    %191 = arith.addf %187, %190 : vector<8x256xf32>
    %cst_89 = arith.constant 5.000000e-01 : f32
    %192 = vector.broadcast %cst_89 : f32 to vector<8x256xf32>
    %193 = arith.mulf %192, %191 : vector<8x256xf32>
    %194 = arith.select %6, %193, %191 : vector<8x256xi1>, vector<8x256xf32>
    %195 = math.tanh %194 : vector<8x256xf32>
    %cst_90 = arith.constant 5.000000e-01 : f32
    %196 = vector.broadcast %cst_90 : f32 to vector<8x256xf32>
    %197 = arith.mulf %196, %195 : vector<8x256xf32>
    %cst_91 = arith.constant 5.000000e-01 : f32
    %198 = vector.broadcast %cst_91 : f32 to vector<8x256xf32>
    %199 = arith.addf %197, %198 : vector<8x256xf32>
    %200 = arith.select %6, %199, %195 : vector<8x256xi1>, vector<8x256xf32>
    %201 = vector.extract_strided_slice %200 {offsets = [0, 0], sizes = [8, 128], strides = [1, 1]} : vector<8x256xf32> to vector<8x128xf32>
    %202 = vector.extract_strided_slice %200 {offsets = [0, 128], sizes = [8, 128], strides = [1, 1]} : vector<8x256xf32> to vector<8x128xf32>
    %c64_i32_92 = arith.constant 64 : i32
    %203 = tpu.dynamic_rotate %202 by %c64_i32_92 dim 1 : vector<8x128xf32>, i32 -> vector<8x128xf32>
    %204 = arith.mulf %201, %203 : vector<8x128xf32>
    %205 = arith.mulf %202, %183 : vector<8x128xf32>
    %206 = arith.addf %204, %205 : vector<8x128xf32>
    %c64_i32_93 = arith.constant 64 : i32
    %207 = tpu.dynamic_rotate %206 by %c64_i32_93 dim 1 : vector<8x128xf32>, i32 -> vector<8x128xf32>
    %208 = arith.select %9, %206, %207 : vector<8x128xi1>, vector<8x128xf32>
    %209 = math.tanh %208 : vector<8x128xf32>
    %210 = arith.mulf %201, %209 : vector<8x128xf32>
    %c56_94 = arith.constant 56 : index
    %c0_95 = arith.constant 0 : index
    %211 = vector.load %arg9[%c56_94, %c0_95] : memref<64x128xf32, #tpu.memory_space<vmem>>, vector<8x128xf32>
    tpu.vector_store %arg9[%c56_94, %c0_95], %210 {strides = array<i32>} : memref<64x128xf32, #tpu.memory_space<vmem>>, vector<8x128xf32>,
    %c0_96 = arith.constant 0 : index
    %c0_97 = arith.constant 0 : index
    %212 = vector.load %arg9[%c0_96, %c0_97] : memref<64x128xf32, #tpu.memory_space<vmem>>, vector<64x128xf32>
    %cst_98 = arith.constant 0.000000e+00 : f32
    %213 = vector.broadcast %cst_98 : f32 to vector<64x128xf32>
    %214 = arith.maximumf %212, %213 : vector<64x128xf32>
    %215 = arith.truncf %214 : vector<64x128xf32> to vector<64x128xbf16>
    %c0_99 = arith.constant 0 : index
    %c0_100 = arith.constant 0 : index
    %216 = vector.load %arg3[%c0_99, %c0_100] : memref<128x128xbf16, #tpu.memory_space<vmem>>, vector<128x128xbf16>
    %cst_101 = arith.constant dense<0.000000e+00> : vector<64x128xf32>
    %217 = tpu.matmul %215, %216, %cst_101 {dimension_numbers = #tpu.dot_dimension_numbers<[1], [0], [0], [1], [0, 0, 1, 1], [], []>} : vector<64x128xbf16>, vector<128x128xbf16>, vector<64x128xf32> -> vector<64x128xf32>
    %c0_102 = arith.constant 0 : index
    %c0_103 = arith.constant 0 : index
    %218 = vector.load %arg4[%c0_102, %c0_103] : memref<1x128xf32, #tpu.memory_space<vmem>>, vector<1x128xf32>
    %219 = vector.broadcast %218 : vector<1x128xf32> to vector<64x128xf32>
    %220 = arith.addf %217, %219 : vector<64x128xf32>
    %cst_104 = arith.constant 0.000000e+00 : f32
    %221 = vector.broadcast %cst_104 : f32 to vector<64x128xf32>
    %222 = arith.maximumf %220, %221 : vector<64x128xf32>
    %223 = arith.truncf %222 : vector<64x128xf32> to vector<64x128xbf16>
    %c0_105 = arith.constant 0 : index
    %c0_106 = arith.constant 0 : index
    %224 = vector.load %arg5[%c0_105, %c0_106] : memref<128x128xbf16, #tpu.memory_space<vmem>>, vector<128x128xbf16>
    %cst_107 = arith.constant dense<0.000000e+00> : vector<64x128xf32>
    %225 = tpu.matmul %223, %224, %cst_107 {dimension_numbers = #tpu.dot_dimension_numbers<[1], [0], [0], [1], [0, 0, 1, 1], [], []>} : vector<64x128xbf16>, vector<128x128xbf16>, vector<64x128xf32> -> vector<64x128xf32>
    %c0_108 = arith.constant 0 : index
    %c0_109 = arith.constant 0 : index
    %226 = vector.load %arg6[%c0_108, %c0_109] : memref<1x128xf32, #tpu.memory_space<vmem>>, vector<1x128xf32>
    %227 = vector.broadcast %226 : vector<1x128xf32> to vector<64x128xf32>
    %228 = arith.addf %225, %227 : vector<64x128xf32>
    %c0_110 = arith.constant 0 : index
    %c0_111 = arith.constant 0 : index
    %229 = vector.load %arg7[%c0_110, %c0_111] : memref<64x128xf32, #tpu.memory_space<vmem>>, vector<64x128xf32>
    tpu.vector_store %arg7[%c0_110, %c0_111], %228 {strides = array<i32>} : memref<64x128xf32, #tpu.memory_space<vmem>>, vector<64x128xf32>,
    return
  }
}

</mosaic_0001>

<llo_original>
// kernel: tpu_custom_call.1
$region0: #{tpu_custom_call.1}
  #allocation0 [shape = 'u32[]', space=smem, size = 0x4, offset = 0x4, fixed_abs, tag = 'smem constant byte address 0x4 - core index']
  #allocation1 [shape = 'u32[144,128]{1,0:T(1,128)}', space=vmem, size = 0x12000, scoped, tag = 'internal scratch']
  #allocation2 [shape = 'f32[64,256]{1,0:T(8,128)}', space=vmem, size = 0x10000, scoped, tag = 'scratch operand']
  #allocation3 [shape = 'f32[64,128]{1,0:T(8,128)}', space=vmem, size = 0x8000, scoped, tag = 'scratch operand']
  %s0 = inlined_call_operand.vmem [shape: bf16[64,32], index: 0, kind: input, shape index: {}]
  %s1 = inlined_call_operand.hbm [shape: bf16[32,256], index: 1, kind: input, shape index: {}]
  %s2 = inlined_call_operand.hbm [shape: bf16[128,256], index: 2, kind: input, shape index: {}]
  %s3 = inlined_call_operand.hbm [shape: bf16[128,128], index: 3, kind: input, shape index: {}]
  %s4 = inlined_call_operand.vmem [shape: f32[1,128], index: 4, kind: input, shape index: {}]
  %s5 = inlined_call_operand.vmem [shape: bf16[128,128], index: 5, kind: input, shape index: {}]
  %s6 = inlined_call_operand.vmem [shape: f32[1,128], index: 6, kind: input, shape index: {}]
  %s7 = inlined_call_operand.hbm [shape: f32[64,128], index: 7, kind: output, shape index: {}]
  %s8 = sld [smem:[#allocation0]]
  $region50: #{tpu_custom_call.1} parent=0
    _
  %s10 = ssub.s32 1, %s8
  %s11 = scalar_select 0, %s10, %s8
  $region1: #{tpu_custom_call.1} parent=0
    #allocation4 [shape = 'u8[16384]{0}', space=vmem, size = 0x4000, scoped, tag = 'input window, operand 1, single buffered']
    #allocation5 [shape = 's32[1]{0}', space=sflag, size = 0x4, scoped, tag = 'scoped memory for tpu_custom_call.1']
    #allocation6 [shape = 's32[1]{0}', space=sflag, size = 0x4, scoped, tag = 'scoped memory for tpu_custom_call.1']
    #allocation7 [shape = 'u8[65536]{0}', space=vmem, size = 0x10000, scoped, tag = 'input window, operand 2, single buffered']
    #allocation8 [shape = 's32[1]{0}', space=sflag, size = 0x4, scoped, tag = 'scoped memory for tpu_custom_call.1']
    #allocation9 [shape = 'u8[32768]{0}', space=vmem, size = 0x8000, scoped, tag = 'input window, operand 3, single buffered']
    #allocation10 [shape = 'u8[32768]{0}', space=vmem, size = 0x8000, scoped, tag = 'output window, operand 0, single buffered']
    %12 = vsyncpa [#allocation5], 0
    %13 = vsyncpa [#allocation8], 0
    %14 = vsyncpa [#allocation6], 0
    // Predicated region
    $region2: #{tpu_custom_call.1} parent=1 // pred_check
      _
    $region3: #{tpu_custom_call.1} parent=1 // pred_check_branch
      %16 = sbr.rel (0) target = $region5
    $region4: #{tpu_custom_call.1} parent=1 // pred_region
      _
    $region5: #{tpu_custom_call.1} parent=1 // pred_fallthru
      _
    // Predicated region
    $region6: #{tpu_custom_call.1} parent=1 // pred_check
      _
    $region7: #{tpu_custom_call.1} parent=1 // pred_check_branch
      %18 = sbr.rel (0) target = $region9
    $region8: #{tpu_custom_call.1} parent=1 // pred_region
      %s20 = ssub.s32 512, 512
      %21 = vsyncadd [#allocation5], %s20
      %s22 = sshll.u32 [#allocation4], 4
      %s23 = int_to_ptr.vmem [resolvable:$true] %s22
      %28 = dma.hbm_to_vmem [thread:$0]  %s1, 512, %s23, [#allocation5], 128, 128, 8
    $region9: #{tpu_custom_call.1} parent=1 // pred_fallthru
      _
    // Predicated region
    $region10: #{tpu_custom_call.1} parent=1 // pred_check
      _
    $region11: #{tpu_custom_call.1} parent=1 // pred_check_branch
      %30 = sbr.rel (0) target = $region13
    $region12: #{tpu_custom_call.1} parent=1 // pred_region
      %s32 = ssub.s32 2048, 2048
      %33 = vsyncadd [#allocation8], %s32
      %s34 = sshll.u32 [#allocation7], 4
      %s35 = int_to_ptr.vmem [resolvable:$true] %s34
      %40 = dma.hbm_to_vmem [thread:$0]  %s2, 2048, %s35, [#allocation8], 128, 128, 8
    $region13: #{tpu_custom_call.1} parent=1 // pred_fallthru
      _
    // Predicated region
    $region14: #{tpu_custom_call.1} parent=1 // pred_check
      _
    $region15: #{tpu_custom_call.1} parent=1 // pred_check_branch
      %42 = sbr.rel (0) target = $region17
    $region16: #{tpu_custom_call.1} parent=1 // pred_region
      %s44 = ssub.s32 1024, 1024
      %45 = vsyncadd [#allocation8], %s44
      %s46 = sshll.u32 [#allocation9], 4
      %s47 = int_to_ptr.vmem [resolvable:$true] %s46
      %52 = dma.hbm_to_vmem [thread:$0]  %s3, 1024, %s47, [#allocation8], 64, 64, 4
    $region17: #{tpu_custom_call.1} parent=1 // pred_fallthru
      _
    // Predicated region
    $region18: #{tpu_custom_call.1} parent=1 // pred_check
      _
    $region19: #{tpu_custom_call.1} parent=1 // pred_check_branch
      %54 = sbr.rel (0) target = $region21
    $region20: #{tpu_custom_call.1} parent=1 // pred_region
      _
    $region21: #{tpu_custom_call.1} parent=1 // pred_fallthru
      _
    // Predicated region
    $region22: #{tpu_custom_call.1} parent=1 // pred_check
      _
    $region23: #{tpu_custom_call.1} parent=1 // pred_check_branch
      %56 = sbr.rel (0) target = $region25
    $region24: #{tpu_custom_call.1} parent=1 // pred_region
      _
    $region25: #{tpu_custom_call.1} parent=1 // pred_fallthru
      _
    // Predicated region
    $region26: #{tpu_custom_call.1} parent=1 // pred_check
      _
    $region27: #{tpu_custom_call.1} parent=1 // pred_check_branch
      %58 = sbr.rel (0) target = $region29
    $region28: #{tpu_custom_call.1} parent=1 // pred_region
      _
    $region29: #{tpu_custom_call.1} parent=1 // pred_fallthru
      _
    // Predicated region
    $region30: #{tpu_custom_call.1} parent=1 // pred_check
      _
    $region31: #{tpu_custom_call.1} parent=1 // pred_check_branch
      %60 = sbr.rel (0) target = $region33
    $region32: #{tpu_custom_call.1} parent=1 // pred_region
      %61 = dma.done [#allocation5], 512
    $region33: #{tpu_custom_call.1} parent=1 // pred_fallthru
      _
    // Predicated region
    $region34: #{tpu_custom_call.1} parent=1 // pred_check
      _
    $region35: #{tpu_custom_call.1} parent=1 // pred_check_branch
      %63 = sbr.rel (0) target = $region37
    $region36: #{tpu_custom_call.1} parent=1 // pred_region
      %64 = dma.done [#allocation8], 2048
    $region37: #{tpu_custom_call.1} parent=1 // pred_fallthru
      _
    // Predicated region
    $region38: #{tpu_custom_call.1} parent=1 // pred_check
      _
    $region39: #{tpu_custom_call.1} parent=1 // pred_check_branch
      %66 = sbr.rel (0) target = $region41
    $region40: #{tpu_custom_call.1} parent=1 // pred_region
      %67 = dma.done [#allocation8], 1024
    $region41: #{tpu_custom_call.1} parent=1 // pred_fallthru
      _
    %v69 = vld [vmem:[%s0] sm:$0xf]
    %v70 = vld [vmem:[%s0 + $0x4] sm:$0xf]
    %v71 = vld [vmem:[%s0 + $0x8] sm:$0xf]
    %v72 = vld [vmem:[%s0 + $0xc] sm:$0xf]
    %v73 = vld [vmem:[%s0 + $0x10] sm:$0xf]
    %v74 = vld [vmem:[%s0 + $0x14] sm:$0xf]
    %v75 = vld [vmem:[%s0 + $0x18] sm:$0xf]
    %v76 = vld [vmem:[%s0 + $0x1c] sm:$0xf]
    %v77 = vld [vmem:[#allocation4] sm:$0xff]
    %v78 = vld [vmem:[#allocation4 + $0x8] sm:$0xff]
    %v79 = vld [vmem:[#allocation4 + $0x10] sm:$0xff]
    %v80 = vld [vmem:[#allocation4 + $0x18] sm:$0xff]
    %v89 = vunpack.c.l.b16 %v69
    %v90 = vunpack.c.l.b16 %v70
    %v91 = vunpack.c.l.b16 %v71
    %v92 = vunpack.c.l.b16 %v72
    %v93 = vunpack.c.l.b16 %v73
    %v94 = vunpack.c.l.b16 %v74
    %v95 = vunpack.c.l.b16 %v75
    %v96 = vunpack.c.l.b16 %v76
    %v97 = vpack.c.b16 %v90, %v89
    %v98 = vpack.c.b16 %v92, %v91
    %v99 = vpack.c.b16 %v94, %v93
    %v100 = vpack.c.b16 %v96, %v95
    %v105 = vunpack.c.l.b16 %v77
    %v106 = vunpack.c.h.b16 %v77
    %v107 = vunpack.c.l.b16 %v78
    %v108 = vunpack.c.h.b16 %v78
    %v109 = vunpack.c.l.b16 %v79
    %v110 = vunpack.c.h.b16 %v79
    %v111 = vunpack.c.l.b16 %v80
    %v112 = vunpack.c.h.b16 %v80
    %v113 = vpack.c.b16 %v107, %v105
    %v114 = vpack.c.b16 %v108, %v106
    %v115 = vpack.c.b16 %v111, %v109
    %v116 = vpack.c.b16 %v112, %v110
    %vm121 = vcmask 261120
    %v123 = vsel %vm121, %v97, 0
    %v126 = vsel %vm121, %v98, 0
    %v129 = vsel %vm121, %v99, 0
    %v132 = vsel %vm121, %v100, 0
    %134 = vmatprep.subr.bf16.mxu0 %v114
    %135 = vmatpush1.bf16.msra.mxu0 %v113
    %136 = vmatprep.subr.bf16.mxu0 %v116
    %137 = vmatpush1.bf16.msra.mxu0 %v115
    %138 = vmatprep.subr.bf16.mxu0 0
    %139 = vmatpush1.bf16.msra.mxu0 0
    %140 = vmatprep.subr.bf16.mxu0 0
    %141 = vmatpush1.bf16.msra.mxu0 0
    %142 = vmatprep.subr.bf16.mxu0 0
    %143 = vmatpush1.bf16.msra.mxu0 0
    %144 = vmatprep.subr.bf16.mxu0 0
    %145 = vmatpush1.bf16.msra.mxu0 0
    %146 = vmatprep.subr.bf16.mxu0 0
    %147 = vmatpush1.bf16.msra.mxu0 0
    %148 = vmatprep.subr.bf16.mxu0 0
    %149 = vmatpush1.bf16.msra.mxu0 0
    %150 = vmatprep.subr.bf16.mxu0 0
    %151 = vmatpush1.bf16.msra.mxu0 0
    %152 = vmatprep.subr.bf16.mxu0 0
    %153 = vmatpush1.bf16.msra.mxu0 0
    %154 = vmatprep.subr.bf16.mxu0 0
    %155 = vmatpush1.bf16.msra.mxu0 0
    %156 = vmatprep.subr.bf16.mxu0 0
    %157 = vmatpush1.bf16.msra.mxu0 0
    %158 = vmatprep.subr.bf16.mxu0 0
    %159 = vmatpush1.bf16.msra.mxu0 0
    %160 = vmatprep.subr.bf16.mxu0 0
    %161 = vmatpush1.bf16.msra.mxu0 0
    %162 = vmatprep.subr.bf16.mxu0 0
    %163 = vmatpush1.bf16.msra.mxu0 0
    %164 = vmatprep.subr.bf16.mxu0 0
    %165 = vmatpush1.bf16.msra.mxu0 0
    %166 = vmatprep.mubr.bf16.mxu0 0
    %167 = vmatmul.mubr.bf16.gmra.mrb[0].mxu0 %v123
    %v168 = vpop.f32.mrb[0].mxu0
    %v169 = vadd.f32 0.0, %v168
    %v170 = vpop.f32.mrb[0].mxu0
    %v171 = vadd.f32 0.0, %v170
    %v172 = vpop.f32.mrb[0].mxu0
    %v173 = vadd.f32 0.0, %v172
    %v174 = vpop.f32.mrb[0].mxu0
    %v175 = vadd.f32 0.0, %v174
    %176 = vmatprep.mubr.bf16.mxu0 0
    %177 = vmatmul.mubr.bf16.gmra.mrb[0].mxu0 %v126
    %v178 = vpop.f32.mrb[0].mxu0
    %v179 = vadd.f32 0.0, %v178
    %v180 = vpop.f32.mrb[0].mxu0
    %v181 = vadd.f32 0.0, %v180
    %v182 = vpop.f32.mrb[0].mxu0
    %v183 = vadd.f32 0.0, %v182
    %v184 = vpop.f32.mrb[0].mxu0
    %v185 = vadd.f32 0.0, %v184
    %186 = vmatprep.mubr.bf16.mxu0 0
    %187 = vmatmul.mubr.bf16.gmra.mrb[0].mxu0 %v129
    %v188 = vpop.f32.mrb[0].mxu0
    %v189 = vadd.f32 0.0, %v188
    %v190 = vpop.f32.mrb[0].mxu0
    %v191 = vadd.f32 0.0, %v190
    %v192 = vpop.f32.mrb[0].mxu0
    %v193 = vadd.f32 0.0, %v192
    %v194 = vpop.f32.mrb[0].mxu0
    %v195 = vadd.f32 0.0, %v194
    %196 = vmatprep.mubr.bf16.mxu0 0
    %197 = vmatmul.mubr.bf16.gmra.mrb[0].mxu0 %v132
    %v198 = vpop.f32.mrb[0].mxu0
    %v199 = vadd.f32 0.0, %v198
    %v200 = vpop.f32.mrb[0].mxu0
    %v201 = vadd.f32 0.0, %v200
    %v202 = vpop.f32.mrb[0].mxu0
    %v203 = vadd.f32 0.0, %v202
    %v204 = vpop.f32.mrb[0].mxu0
    %v205 = vadd.f32 0.0, %v204
    %206 = vdwg.mxu0
    %207 = vst [vmem:[#allocation2] sm:$0xff] %v169
    %208 = vst [vmem:[#allocation2 + $0x8] sm:$0xff] %v171
    %209 = vst [vmem:[#allocation2 + $0x10] sm:$0xff] %v173
    %210 = vst [vmem:[#allocation2 + $0x18] sm:$0xff] %v175
    %211 = vst [vmem:[#allocation2 + $0x20] sm:$0xff] %v179
    %212 = vst [vmem:[#allocation2 + $0x28] sm:$0xff] %v181
    %213 = vst [vmem:[#allocation2 + $0x30] sm:$0xff] %v183
    %214 = vst [vmem:[#allocation2 + $0x38] sm:$0xff] %v185
    %215 = vst [vmem:[#allocation2 + $0x40] sm:$0xff] %v189
    %216 = vst [vmem:[#allocation2 + $0x48] sm:$0xff] %v191
    %217 = vst [vmem:[#allocation2 + $0x50] sm:$0xff] %v193
    %218 = vst [vmem:[#allocation2 + $0x58] sm:$0xff] %v195
    %219 = vst [vmem:[#allocation2 + $0x60] sm:$0xff] %v199
    %220 = vst [vmem:[#allocation2 + $0x68] sm:$0xff] %v201
    %221 = vst [vmem:[#allocation2 + $0x70] sm:$0xff] %v203
    %222 = vst [vmem:[#allocation2 + $0x78] sm:$0xff] %v205
    %v223 = vlaneseq
    %v224 = vand.u32 %v223, 127
    %v225 = vadd.s32 %v224, 128
    %vm226 = vcmp.lt.s32.totalorder %v224, 192
    %vm227 = vcmp.lt.s32.totalorder %v225, 192
    %vm228 = vcmp.lt.s32.totalorder %v224, 64
    %v229 = vld [vmem:[#allocation2] sm:$0xff]
    %v230 = vld [vmem:[#allocation2 + $0x8] sm:$0xff]
    %v231 = vld [vmem:[#allocation7] sm:$0xff]
    %v232 = vld [vmem:[#allocation7 + $0x8] sm:$0xff]
    %v233 = vld [vmem:[#allocation7 + $0x10] sm:$0xff]
    %v234 = vld [vmem:[#allocation7 + $0x18] sm:$0xff]
    %v235 = vld [vmem:[#allocation7 + $0x20] sm:$0xff]
    %v236 = vld [vmem:[#allocation7 + $0x28] sm:$0xff]
    %v237 = vld [vmem:[#allocation7 + $0x30] sm:$0xff]
    %v238 = vld [vmem:[#allocation7 + $0x38] sm:$0xff]
    %v239 = vld [vmem:[#allocation7 + $0x40] sm:$0xff]
    %v240 = vld [vmem:[#allocation7 + $0x48] sm:$0xff]
    %v241 = vld [vmem:[#allocation7 + $0x50] sm:$0xff]
    %v242 = vld [vmem:[#allocation7 + $0x58] sm:$0xff]
    %v243 = vld [vmem:[#allocation7 + $0x60] sm:$0xff]
    %v244 = vld [vmem:[#allocation7 + $0x68] sm:$0xff]
    %v245 = vld [vmem:[#allocation7 + $0x70] sm:$0xff]
    %v246 = vld [vmem:[#allocation7 + $0x78] sm:$0xff]
    %v263 = vunpack.c.l.b16 %v231
    %v264 = vunpack.c.h.b16 %v231
    %v265 = vunpack.c.l.b16 %v232
    %v266 = vunpack.c.h.b16 %v232
    %v267 = vunpack.c.l.b16 %v233
    %v268 = vunpack.c.h.b16 %v233
    %v269 = vunpack.c.l.b16 %v234
    %v270 = vunpack.c.h.b16 %v234
    %v271 = vunpack.c.l.b16 %v235
    %v272 = vunpack.c.h.b16 %v235
    %v273 = vunpack.c.l.b16 %v236
    %v274 = vunpack.c.h.b16 %v236
    %v275 = vunpack.c.l.b16 %v237
    %v276 = vunpack.c.h.b16 %v237
    %v277 = vunpack.c.l.b16 %v238
    %v278 = vunpack.c.h.b16 %v238
    %v279 = vunpack.c.l.b16 %v239
    %v280 = vunpack.c.h.b16 %v239
    %v281 = vunpack.c.l.b16 %v240
    %v282 = vunpack.c.h.b16 %v240
    %v283 = vunpack.c.l.b16 %v241
    %v284 = vunpack.c.h.b16 %v241
    %v285 = vunpack.c.l.b16 %v242
    %v286 = vunpack.c.h.b16 %v242
    %v287 = vunpack.c.l.b16 %v243
    %v288 = vunpack.c.h.b16 %v243
    %v289 = vunpack.c.l.b16 %v244
    %v290 = vunpack.c.h.b16 %v244
    %v291 = vunpack.c.l.b16 %v245
    %v292 = vunpack.c.h.b16 %v245
    %v293 = vunpack.c.l.b16 %v246
    %v294 = vunpack.c.h.b16 %v246
    %v295 = vpack.c.b16 %v265, %v263
    %v296 = vpack.c.b16 %v266, %v264
    %v297 = vpack.c.b16 %v269, %v267
    %v298 = vpack.c.b16 %v270, %v268
    %v299 = vpack.c.b16 %v273, %v271
    %v300 = vpack.c.b16 %v274, %v272
    %v301 = vpack.c.b16 %v277, %v275
    %v302 = vpack.c.b16 %v278, %v276
    %v303 = vpack.c.b16 %v281, %v279
    %v304 = vpack.c.b16 %v282, %v280
    %v305 = vpack.c.b16 %v285, %v283
    %v306 = vpack.c.b16 %v286, %v284
    %v307 = vpack.c.b16 %v289, %v287
    %v308 = vpack.c.b16 %v290, %v288
    %v309 = vpack.c.b16 %v293, %v291
    %v310 = vpack.c.b16 %v294, %v292
    %327 = vmatprep.subr.bf16.mxu0 %v296
    %328 = vmatpush1.bf16.msra.mxu0 %v295
    %329 = vmatprep.subr.bf16.mxu0 %v298
    %330 = vmatpush1.bf16.msra.mxu0 %v297
    %331 = vmatprep.subr.bf16.mxu0 %v300
    %332 = vmatpush1.bf16.msra.mxu0 %v299
    %333 = vmatprep.subr.bf16.mxu0 %v302
    %334 = vmatpush1.bf16.msra.mxu0 %v301
    %335 = vmatprep.subr.bf16.mxu0 %v304
    %336 = vmatpush1.bf16.msra.mxu0 %v303
    %337 = vmatprep.subr.bf16.mxu0 %v306
    %338 = vmatpush1.bf16.msra.mxu0 %v305
    %339 = vmatprep.subr.bf16.mxu0 %v308
    %340 = vmatpush1.bf16.msra.mxu0 %v307
    %341 = vmatprep.subr.bf16.mxu0 %v310
    %342 = vmatpush1.bf16.msra.mxu0 %v309
    %343 = vmatprep.subr.bf16.mxu0 0
    %344 = vmatpush1.bf16.msra.mxu0 0
    %345 = vmatprep.subr.bf16.mxu0 0
    %346 = vmatpush1.bf16.msra.mxu0 0
    %347 = vmatprep.subr.bf16.mxu0 0
    %348 = vmatpush1.bf16.msra.mxu0 0
    %349 = vmatprep.subr.bf16.mxu0 0
    %350 = vmatpush1.bf16.msra.mxu0 0
    %351 = vmatprep.subr.bf16.mxu0 0
    %352 = vmatpush1.bf16.msra.mxu0 0
    %353 = vmatprep.subr.bf16.mxu0 0
    %354 = vmatpush1.bf16.msra.mxu0 0
    %355 = vmatprep.subr.bf16.mxu0 0
    %356 = vmatpush1.bf16.msra.mxu0 0
    %357 = vmatprep.subr.bf16.mxu0 0
    %358 = vmatpush1.bf16.msra.mxu0 0
    %359 = vmatprep.mubr.bf16.mxu0 0
    %360 = vmatmul.mubr.bf16.gmra.mrb[0].mxu0 0
    %v361 = vpop.f32.mrb[0].mxu0
    %v362 = vadd.f32 0.0, %v361
    %v363 = vpop.f32.mrb[0].mxu0
    %v364 = vadd.f32 0.0, %v363
    %v365 = vpop.f32.mrb[0].mxu0
    %v366 = vpop.f32.mrb[0].mxu0
    %367 = vdwg.mxu0
    %v368 = vadd.f32 %v229, %v362
    %v369 = vadd.f32 %v230, %v364
    %v370 = vmul.f32 %v368, 0.5
    %v371 = vmul.f32 %v369, 0.5
    %v372 = vsel %vm226, %v370, %v368
    %v373 = vsel %vm227, %v371, %v369
    %v374 = vtanh.pop %v372
    %v375 = vtanh.pop %v373
    %v376 = vmul.f32 %v374, 0.5
    %v377 = vmul.f32 %v375, 0.5
    %v378 = vadd.f32 %v376, 0.5
    %v379 = vadd.f32 %v377, 0.5
    %v380 = vsel %vm226, %v378, %v374
    %v381 = vsel %vm227, %v379, %v375
    %382 = vrot.lane.b32.xlu0 %v381, 64
    %v383 = vpop.permute.xlu0 %382
    %v384 = vmul.f32 %v380, %v383
    %v385 = vmul.f32 %v381, 0.0
    %v386 = vadd.f32 %v384, %v385
    %387 = vrot.lane.b32.xlu0 %v386, 64
    %v388 = vpop.permute.xlu0 %387
    %v389 = vsel %vm228, %v386, %v388
    %v390 = vtanh.pop %v389
    %v391 = vmul.f32 %v380, %v390
    %392 = vst [vmem:[#allocation3] sm:$0xff] %v391
    %v393 = vld [vmem:[#allocation2 + $0x10] sm:$0xff]
    %v394 = vld [vmem:[#allocation2 + $0x18] sm:$0xff]
    %v395 = vpack.c.bf16 %v391, %v391
    %v396 = vld [vmem:[#allocation7] sm:$0xff]
    %v397 = vld [vmem:[#allocation7 + $0x8] sm:$0xff]
    %v398 = vld [vmem:[#allocation7 + $0x10] sm:$0xff]
    %v399 = vld [vmem:[#allocation7 + $0x18] sm:$0xff]
    %v400 = vld [vmem:[#allocation7 + $0x20] sm:$0xff]
    %v401 = vld [vmem:[#allocation7 + $0x28] sm:$0xff]
    %v402 = vld [vmem:[#allocation7 + $0x30] sm:$0xff]
    %v403 = vld [vmem:[#allocation7 + $0x38] sm:$0xff]
    %v404 = vld [vmem:[#allocation7 + $0x40] sm:$0xff]
    %v405 = vld [vmem:[#allocation7 + $0x48] sm:$0xff]
    %v406 = vld [vmem:[#allocation7 + $0x50] sm:$0xff]
    %v407 = vld [vmem:[#allocation7 + $0x58] sm:$0xff]
    %v408 = vld [vmem:[#allocation7 + $0x60] sm:$0xff]
    %v409 = vld [vmem:[#allocation7 + $0x68] sm:$0xff]
    %v410 = vld [vmem:[#allocation7 + $0x70] sm:$0xff]
    %v411 = vld [vmem:[#allocation7 + $0x78] sm:$0xff]
    %v428 = vunpack.c.l.b16 %v396
    %v429 = vunpack.c.h.b16 %v396
    %v430 = vunpack.c.l.b16 %v397
    %v431 = vunpack.c.h.b16 %v397
    %v432 = vunpack.c.l.b16 %v398
    %v433 = vunpack.c.h.b16 %v398
    %v434 = vunpack.c.l.b16 %v399
    %v435 = vunpack.c.h.b16 %v399
    %v436 = vunpack.c.l.b16 %v400
    %v437 = vunpack.c.h.b16 %v400
    %v438 = vunpack.c.l.b16 %v401
    %v439 = vunpack.c.h.b16 %v401
    %v440 = vunpack.c.l.b16 %v402
    %v441 = vunpack.c.h.b16 %v402
    %v442 = vunpack.c.l.b16 %v403
    %v443 = vunpack.c.h.b16 %v403
    %v444 = vunpack.c.l.b16 %v404
    %v445 = vunpack.c.h.b16 %v404
    %v446 = vunpack.c.l.b16 %v405
    %v447 = vunpack.c.h.b16 %v405
    %v448 = vunpack.c.l.b16 %v406
    %v449 = vunpack.c.h.b16 %v406
    %v450 = vunpack.c.l.b16 %v407
    %v451 = vunpack.c.h.b16 %v407
    %v452 = vunpack.c.l.b16 %v408
    %v453 = vunpack.c.h.b16 %v408
    %v454 = vunpack.c.l.b16 %v409
    %v455 = vunpack.c.h.b16 %v409
    %v456 = vunpack.c.l.b16 %v410
    %v457 = vunpack.c.h.b16 %v410
    %v458 = vunpack.c.l.b16 %v411
    %v459 = vunpack.c.h.b16 %v411
    %v460 = vpack.c.b16 %v430, %v428
    %v461 = vpack.c.b16 %v431, %v429
    %v462 = vpack.c.b16 %v434, %v432
    %v463 = vpack.c.b16 %v435, %v433
    %v464 = vpack.c.b16 %v438, %v436
    %v465 = vpack.c.b16 %v439, %v437
    %v466 = vpack.c.b16 %v442, %v440
    %v467 = vpack.c.b16 %v443, %v441
    %v468 = vpack.c.b16 %v446, %v444
    %v469 = vpack.c.b16 %v447, %v445
    %v470 = vpack.c.b16 %v450, %v448
    %v471 = vpack.c.b16 %v451, %v449
    %v472 = vpack.c.b16 %v454, %v452
    %v473 = vpack.c.b16 %v455, %v453
    %v474 = vpack.c.b16 %v458, %v456
    %v475 = vpack.c.b16 %v459, %v457
    %492 = vmatprep.subr.bf16.mxu0 %v461
    %493 = vmatpush1.bf16.msra.mxu0 %v460
    %494 = vmatprep.subr.bf16.mxu0 %v463
    %495 = vmatpush1.bf16.msra.mxu0 %v462
    %496 = vmatprep.subr.bf16.mxu0 %v465
    %497 = vmatpush1.bf16.msra.mxu0 %v464
    %498 = vmatprep.subr.bf16.mxu0 %v467
    %499 = vmatpush1.bf16.msra.mxu0 %v466
    %500 = vmatprep.subr.bf16.mxu0 %v469
    %501 = vmatpush1.bf16.msra.mxu0 %v468
    %502 = vmatprep.subr.bf16.mxu0 %v471
    %503 = vmatpush1.bf16.msra.mxu0 %v470
    %504 = vmatprep.subr.bf16.mxu0 %v473
    %505 = vmatpush1.bf16.msra.mxu0 %v472
    %506 = vmatprep.subr.bf16.mxu0 %v475
    %507 = vmatpush1.bf16.msra.mxu0 %v474
    %508 = vmatprep.subr.bf16.mxu0 0
    %509 = vmatpush1.bf16.msra.mxu0 0
    %510 = vmatprep.subr.bf16.mxu0 0
    %511 = vmatpush1.bf16.msra.mxu0 0
    %512 = vmatprep.subr.bf16.mxu0 0
    %513 = vmatpush1.bf16.msra.mxu0 0
    %514 = vmatprep.subr.bf16.mxu0 0
    %515 = vmatpush1.bf16.msra.mxu0 0
    %516 = vmatprep.subr.bf16.mxu0 0
    %517 = vmatpush1.bf16.msra.mxu0 0
    %518 = vmatprep.subr.bf16.mxu0 0
    %519 = vmatpush1.bf16.msra.mxu0 0
    %520 = vmatprep.subr.bf16.mxu0 0
    %521 = vmatpush1.bf16.msra.mxu0 0
    %522 = vmatprep.subr.bf16.mxu0 0
    %523 = vmatpush1.bf16.msra.mxu0 0
    %524 = vmatprep.mubr.bf16.mxu0 0
    %525 = vmatmul.mubr.bf16.gmra.mrb[0].mxu0 %v395
    %v526 = vpop.f32.mrb[0].mxu0
    %v527 = vadd.f32 0.0, %v526
    %v528 = vpop.f32.mrb[0].mxu0
    %v529 = vadd.f32 0.0, %v528
    %v530 = vpop.f32.mrb[0].mxu0
    %v531 = vpop.f32.mrb[0].mxu0
    %532 = vdwg.mxu0
    %v533 = vadd.f32 %v393, %v527
    %v534 = vadd.f32 %v394, %v529
    %v535 = vmul.f32 %v533, 0.5
    %v536 = vmul.f32 %v534, 0.5
    %v537 = vsel %vm226, %v535, %v533
    %v538 = vsel %vm227, %v536, %v534
    %v539 = vtanh.pop %v537
    %v540 = vtanh.pop %v538
    %v541 = vmul.f32 %v539, 0.5
    %v542 = vmul.f32 %v540, 0.5
    %v543 = vadd.f32 %v541, 0.5
    %v544 = vadd.f32 %v542, 0.5
    %v545 = vsel %vm226, %v543, %v539
    %v546 = vsel %vm227, %v544, %v540
    %547 = vrot.lane.b32.xlu0 %v546, 64
    %v548 = vpop.permute.xlu0 %547
    %v549 = vmul.f32 %v545, %v548
    %v550 = vmul.f32 %v546, %v389
    %v551 = vadd.f32 %v549, %v550
    %552 = vrot.lane.b32.xlu0 %v551, 64
    %v553 = vpop.permute.xlu0 %552
    %v554 = vsel %vm228, %v551, %v553
    %v555 = vtanh.pop %v554
    %v556 = vmul.f32 %v545, %v555
    %557 = vst [vmem:[#allocation3 + $0x8] sm:$0xff] %v556
    %v558 = vld [vmem:[#allocation2 + $0x20] sm:$0xff]
    %v559 = vld [vmem:[#allocation2 + $0x28] sm:$0xff]
    %v560 = vpack.c.bf16 %v556, %v556
    %v561 = vld [vmem:[#allocation7] sm:$0xff]
    %v562 = vld [vmem:[#allocation7 + $0x8] sm:$0xff]
    %v563 = vld [vmem:[#allocation7 + $0x10] sm:$0xff]
    %v564 = vld [vmem:[#allocation7 + $0x18] sm:$0xff]
    %v565 = vld [vmem:[#allocation7 + $0x20] sm:$0xff]
    %v566 = vld [vmem:[#allocation7 + $0x28] sm:$0xff]
    %v567 = vld [vmem:[#allocation7 + $0x30] sm:$0xff]
    %v568 = vld [vmem:[#allocation7 + $0x38] sm:$0xff]
    %v569 = vld [vmem:[#allocation7 + $0x40] sm:$0xff]
    %v570 = vld [vmem:[#allocation7 + $0x48] sm:$0xff]
    %v571 = vld [vmem:[#allocation7 + $0x50] sm:$0xff]
    %v572 = vld [vmem:[#allocation7 + $0x58] sm:$0xff]
    %v573 = vld [vmem:[#allocation7 + $0x60] sm:$0xff]
    %v574 = vld [vmem:[#allocation7 + $0x68] sm:$0xff]
    %v575 = vld [vmem:[#allocation7 + $0x70] sm:$0xff]
    %v576 = vld [vmem:[#allocation7 + $0x78] sm:$0xff]
    %v593 = vunpack.c.l.b16 %v561
    %v594 = vunpack.c.h.b16 %v561
    %v595 = vunpack.c.l.b16 %v562
    %v596 = vunpack.c.h.b16 %v562
    %v597 = vunpack.c.l.b16 %v563
    %v598 = vunpack.c.h.b16 %v563
    %v599 = vunpack.c.l.b16 %v564
    %v600 = vunpack.c.h.b16 %v564
    %v601 = vunpack.c.l.b16 %v565
    %v602 = vunpack.c.h.b16 %v565
    %v603 = vunpack.c.l.b16 %v566
    %v604 = vunpack.c.h.b16 %v566
    %v605 = vunpack.c.l.b16 %v567
    %v606 = vunpack.c.h.b16 %v567
    %v607 = vunpack.c.l.b16 %v568
    %v608 = vunpack.c.h.b16 %v568
    %v609 = vunpack.c.l.b16 %v569
    %v610 = vunpack.c.h.b16 %v569
    %v611 = vunpack.c.l.b16 %v570
    %v612 = vunpack.c.h.b16 %v570
    %v613 = vunpack.c.l.b16 %v571
    %v614 = vunpack.c.h.b16 %v571
    %v615 = vunpack.c.l.b16 %v572
    %v616 = vunpack.c.h.b16 %v572
    %v617 = vunpack.c.l.b16 %v573
    %v618 = vunpack.c.h.b16 %v573
    %v619 = vunpack.c.l.b16 %v574
    %v620 = vunpack.c.h.b16 %v574
    %v621 = vunpack.c.l.b16 %v575
    %v622 = vunpack.c.h.b16 %v575
    %v623 = vunpack.c.l.b16 %v576
    %v624 = vunpack.c.h.b16 %v576
    %v625 = vpack.c.b16 %v595, %v593
    %v626 = vpack.c.b16 %v596, %v594
    %v627 = vpack.c.b16 %v599, %v597
    %v628 = vpack.c.b16 %v600, %v598
    %v629 = vpack.c.b16 %v603, %v601
    %v630 = vpack.c.b16 %v604, %v602
    %v631 = vpack.c.b16 %v607, %v605
    %v632 = vpack.c.b16 %v608, %v606
    %v633 = vpack.c.b16 %v611, %v609
    %v634 = vpack.c.b16 %v612, %v610
    %v635 = vpack.c.b16 %v615, %v613
    %v636 = vpack.c.b16 %v616, %v614
    %v637 = vpack.c.b16 %v619, %v617
    %v638 = vpack.c.b16 %v620, %v618
    %v639 = vpack.c.b16 %v623, %v621
    %v640 = vpack.c.b16 %v624, %v622
    %657 = vmatprep.subr.bf16.mxu0 %v626
    %658 = vmatpush1.bf16.msra.mxu0 %v625
    %659 = vmatprep.subr.bf16.mxu0 %v628
    %660 = vmatpush1.bf16.msra.mxu0 %v627
    %661 = vmatprep.subr.bf16.mxu0 %v630
    %662 = vmatpush1.bf16.msra.mxu0 %v629
    %663 = vmatprep.subr.bf16.mxu0 %v632
    %664 = vmatpush1.bf16.msra.mxu0 %v631
    %665 = vmatprep.subr.bf16.mxu0 %v634
    %666 = vmatpush1.bf16.msra.mxu0 %v633
    %667 = vmatprep.subr.bf16.mxu0 %v636
    %668 = vmatpush1.bf16.msra.mxu0 %v635
    %669 = vmatprep.subr.bf16.mxu0 %v638
    %670 = vmatpush1.bf16.msra.mxu0 %v637
    %671 = vmatprep.subr.bf16.mxu0 %v640
    %672 = vmatpush1.bf16.msra.mxu0 %v639
    %673 = vmatprep.subr.bf16.mxu0 0
    %674 = vmatpush1.bf16.msra.mxu0 0
    %675 = vmatprep.subr.bf16.mxu0 0
    %676 = vmatpush1.bf16.msra.mxu0 0
    %677 = vmatprep.subr.bf16.mxu0 0
    %678 = vmatpush1.bf16.msra.mxu0 0
    %679 = vmatprep.subr.bf16.mxu0 0
    %680 = vmatpush1.bf16.msra.mxu0 0
    %681 = vmatprep.subr.bf16.mxu0 0
    %682 = vmatpush1.bf16.msra.mxu0 0
    %683 = vmatprep.subr.bf16.mxu0 0
    %684 = vmatpush1.bf16.msra.mxu0 0
    %685 = vmatprep.subr.bf16.mxu0 0
    %686 = vmatpush1.bf16.msra.mxu0 0
    %687 = vmatprep.subr.bf16.mxu0 0
    %688 = vmatpush1.bf16.msra.mxu0 0
    %689 = vmatprep.mubr.bf16.mxu0 0
    %690 = vmatmul.mubr.bf16.gmra.mrb[0].mxu0 %v560
    %v691 = vpop.f32.mrb[0].mxu0
    %v692 = vadd.f32 0.0, %v691
    %v693 = vpop.f32.mrb[0].mxu0
    %v694 = vadd.f32 0.0, %v693
    %v695 = vpop.f32.mrb[0].mxu0
    %v696 = vpop.f32.mrb[0].mxu0
    %697 = vdwg.mxu0
    %v698 = vadd.f32 %v558, %v692
    %v699 = vadd.f32 %v559, %v694
    %v700 = vmul.f32 %v698, 0.5
    %v701 = vmul.f32 %v699, 0.5
    %v702 = vsel %vm226, %v700, %v698
    %v703 = vsel %vm227, %v701, %v699
    %v704 = vtanh.pop %v702
    %v705 = vtanh.pop %v703
    %v706 = vmul.f32 %v704, 0.5
    %v707 = vmul.f32 %v705, 0.5
    %v708 = vadd.f32 %v706, 0.5
    %v709 = vadd.f32 %v707, 0.5
    %v710 = vsel %vm226, %v708, %v704
    %v711 = vsel %vm227, %v709, %v705
    %712 = vrot.lane.b32.xlu0 %v711, 64
    %v713 = vpop.permute.xlu0 %712
    %v714 = vmul.f32 %v710, %v713
    %v715 = vmul.f32 %v711, %v554
    %v716 = vadd.f32 %v714, %v715
    %717 = vrot.lane.b32.xlu0 %v716, 64
    %v718 = vpop.permute.xlu0 %717
    %v719 = vsel %vm228, %v716, %v718
    %v720 = vtanh.pop %v719
    %v721 = vmul.f32 %v710, %v720
    %722 = vst [vmem:[#allocation3 + $0x10] sm:$0xff] %v721
    %v723 = vld [vmem:[#allocation2 + $0x30] sm:$0xff]
    %v724 = vld [vmem:[#allocation2 + $0x38] sm:$0xff]
    %v725 = vpack.c.bf16 %v721, %v721
    %v726 = vld [vmem:[#allocation7] sm:$0xff]
    %v727 = vld [vmem:[#allocation7 + $0x8] sm:$0xff]
    %v728 = vld [vmem:[#allocation7 + $0x10] sm:$0xff]
    %v729 = vld [vmem:[#allocation7 + $0x18] sm:$0xff]
    %v730 = vld [vmem:[#allocation7 + $0x20] sm:$0xff]
    %v731 = vld [vmem:[#allocation7 + $0x28] sm:$0xff]
    %v732 = vld [vmem:[#allocation7 + $0x30] sm:$0xff]
    %v733 = vld [vmem:[#allocation7 + $0x38] sm:$0xff]
    %v734 = vld [vmem:[#allocation7 + $0x40] sm:$0xff]
    %v735 = vld [vmem:[#allocation7 + $0x48] sm:$0xff]
    %v736 = vld [vmem:[#allocation7 + $0x50] sm:$0xff]
    %v737 = vld [vmem:[#allocation7 + $0x58] sm:$0xff]
    %v738 = vld [vmem:[#allocation7 + $0x60] sm:$0xff]
    %v739 = vld [vmem:[#allocation7 + $0x68] sm:$0xff]
    %v740 = vld [vmem:[#allocation7 + $0x70] sm:$0xff]
    %v741 = vld [vmem:[#allocation7 + $0x78] sm:$0xff]
    %v758 = vunpack.c.l.b16 %v726
    %v759 = vunpack.c.h.b16 %v726
    %v760 = vunpack.c.l.b16 %v727
    %v761 = vunpack.c.h.b16 %v727
    %v762 = vunpack.c.l.b16 %v728
    %v763 = vunpack.c.h.b16 %v728
    %v764 = vunpack.c.l.b16 %v729
    %v765 = vunpack.c.h.b16 %v729
    %v766 = vunpack.c.l.b16 %v730
    %v767 = vunpack.c.h.b16 %v730
    %v768 = vunpack.c.l.b16 %v731
    %v769 = vunpack.c.h.b16 %v731
    %v770 = vunpack.c.l.b16 %v732
    %v771 = vunpack.c.h.b16 %v732
    %v772 = vunpack.c.l.b16 %v733
    %v773 = vunpack.c.h.b16 %v733
    %v774 = vunpack.c.l.b16 %v734
    %v775 = vunpack.c.h.b16 %v734
    %v776 = vunpack.c.l.b16 %v735
    %v777 = vunpack.c.h.b16 %v735
    %v778 = vunpack.c.l.b16 %v736
    %v779 = vunpack.c.h.b16 %v736
    %v780 = vunpack.c.l.b16 %v737
    %v781 = vunpack.c.h.b16 %v737
    %v782 = vunpack.c.l.b16 %v738
    %v783 = vunpack.c.h.b16 %v738
    %v784 = vunpack.c.l.b16 %v739
    %v785 = vunpack.c.h.b16 %v739
    %v786 = vunpack.c.l.b16 %v740
    %v787 = vunpack.c.h.b16 %v740
    %v788 = vunpack.c.l.b16 %v741
    %v789 = vunpack.c.h.b16 %v741
    %v790 = vpack.c.b16 %v760, %v758
    %v791 = vpack.c.b16 %v761, %v759
    %v792 = vpack.c.b16 %v764, %v762
    %v793 = vpack.c.b16 %v765, %v763
    %v794 = vpack.c.b16 %v768, %v766
    %v795 = vpack.c.b16 %v769, %v767
    %v796 = vpack.c.b16 %v772, %v770
    %v797 = vpack.c.b16 %v773, %v771
    %v798 = vpack.c.b16 %v776, %v774
    %v799 = vpack.c.b16 %v777, %v775
    %v800 = vpack.c.b16 %v780, %v778
    %v801 = vpack.c.b16 %v781, %v779
    %v802 = vpack.c.b16 %v784, %v782
    %v803 = vpack.c.b16 %v785, %v783
    %v804 = vpack.c.b16 %v788, %v786
    %v805 = vpack.c.b16 %v789, %v787
    %822 = vmatprep.subr.bf16.mxu0 %v791
    %823 = vmatpush1.bf16.msra.mxu0 %v790
    %824 = vmatprep.subr.bf16.mxu0 %v793
    %825 = vmatpush1.bf16.msra.mxu0 %v792
    %826 = vmatprep.subr.bf16.mxu0 %v795
    %827 = vmatpush1.bf16.msra.mxu0 %v794
    %828 = vmatprep.subr.bf16.mxu0 %v797
    %829 = vmatpush1.bf16.msra.mxu0 %v796
    %830 = vmatprep.subr.bf16.mxu0 %v799
    %831 = vmatpush1.bf16.msra.mxu0 %v798
    %832 = vmatprep.subr.bf16.mxu0 %v801
    %833 = vmatpush1.bf16.msra.mxu0 %v800
    %834 = vmatprep.subr.bf16.mxu0 %v803
    %835 = vmatpush1.bf16.msra.mxu0 %v802
    %836 = vmatprep.subr.bf16.mxu0 %v805
    %837 = vmatpush1.bf16.msra.mxu0 %v804
    %838 = vmatprep.subr.bf16.mxu0 0
    %839 = vmatpush1.bf16.msra.mxu0 0
    %840 = vmatprep.subr.bf16.mxu0 0
    %841 = vmatpush1.bf16.msra.mxu0 0
    %842 = vmatprep.subr.bf16.mxu0 0
    %843 = vmatpush1.bf16.msra.mxu0 0
    %844 = vmatprep.subr.bf16.mxu0 0
    %845 = vmatpush1.bf16.msra.mxu0 0
    %846 = vmatprep.subr.bf16.mxu0 0
    %847 = vmatpush1.bf16.msra.mxu0 0
    %848 = vmatprep.subr.bf16.mxu0 0
    %849 = vmatpush1.bf16.msra.mxu0 0
    %850 = vmatprep.subr.bf16.mxu0 0
    %851 = vmatpush1.bf16.msra.mxu0 0
    %852 = vmatprep.subr.bf16.mxu0 0
    %853 = vmatpush1.bf16.msra.mxu0 0
    %854 = vmatprep.mubr.bf16.mxu0 0
    %855 = vmatmul.mubr.bf16.gmra.mrb[0].mxu0 %v725
    %v856 = vpop.f32.mrb[0].mxu0
    %v857 = vadd.f32 0.0, %v856
    %v858 = vpop.f32.mrb[0].mxu0
    %v859 = vadd.f32 0.0, %v858
    %v860 = vpop.f32.mrb[0].mxu0
    %v861 = vpop.f32.mrb[0].mxu0
    %862 = vdwg.mxu0
    %v863 = vadd.f32 %v723, %v857
    %v864 = vadd.f32 %v724, %v859
    %v865 = vmul.f32 %v863, 0.5
    %v866 = vmul.f32 %v864, 0.5
    %v867 = vsel %vm226, %v865, %v863
    %v868 = vsel %vm227, %v866, %v864
    %v869 = vtanh.pop %v867
    %v870 = vtanh.pop %v868
    %v871 = vmul.f32 %v869, 0.5
    %v872 = vmul.f32 %v870, 0.5
    %v873 = vadd.f32 %v871, 0.5
    %v874 = vadd.f32 %v872, 0.5
    %v875 = vsel %vm226, %v873, %v869
    %v876 = vsel %vm227, %v874, %v870
    %877 = vrot.lane.b32.xlu0 %v876, 64
    %v878 = vpop.permute.xlu0 %877
    %v879 = vmul.f32 %v875, %v878
    %v880 = vmul.f32 %v876, %v719
    %v881 = vadd.f32 %v879, %v880
    %882 = vrot.lane.b32.xlu0 %v881, 64
    %v883 = vpop.permute.xlu0 %882
    %v884 = vsel %vm228, %v881, %v883
    %v885 = vtanh.pop %v884
    %v886 = vmul.f32 %v875, %v885
    %887 = vst [vmem:[#allocation3 + $0x18] sm:$0xff] %v886
    %v888 = vld [vmem:[#allocation2 + $0x40] sm:$0xff]
    %v889 = vld [vmem:[#allocation2 + $0x48] sm:$0xff]
    %v890 = vpack.c.bf16 %v886, %v886
    %v891 = vld [vmem:[#allocation7] sm:$0xff]
    %v892 = vld [vmem:[#allocation7 + $0x8] sm:$0xff]
    %v893 = vld [vmem:[#allocation7 + $0x10] sm:$0xff]
    %v894 = vld [vmem:[#allocation7 + $0x18] sm:$0xff]
    %v895 = vld [vmem:[#allocation7 + $0x20] sm:$0xff]
    %v896 = vld [vmem:[#allocation7 + $0x28] sm:$0xff]
    %v897 = vld [vmem:[#allocation7 + $0x30] sm:$0xff]
    %v898 = vld [vmem:[#allocation7 + $0x38] sm:$0xff]
    %v899 = vld [vmem:[#allocation7 + $0x40] sm:$0xff]
    %v900 = vld [vmem:[#allocation7 + $0x48] sm:$0xff]
    %v901 = vld [vmem:[#allocation7 + $0x50] sm:$0xff]
    %v902 = vld [vmem:[#allocation7 + $0x58] sm:$0xff]
    %v903 = vld [vmem:[#allocation7 + $0x60] sm:$0xff]
    %v904 = vld [vmem:[#allocation7 + $0x68] sm:$0xff]
    %v905 = vld [vmem:[#allocation7 + $0x70] sm:$0xff]
    %v906 = vld [vmem:[#allocation7 + $0x78] sm:$0xff]
    %v923 = vunpack.c.l.b16 %v891
    %v924 = vunpack.c.h.b16 %v891
    %v925 = vunpack.c.l.b16 %v892
    %v926 = vunpack.c.h.b16 %v892
    %v927 = vunpack.c.l.b16 %v893
    %v928 = vunpack.c.h.b16 %v893
    %v929 = vunpack.c.l.b16 %v894
    %v930 = vunpack.c.h.b16 %v894
    %v931 = vunpack.c.l.b16 %v895
    %v932 = vunpack.c.h.b16 %v895
    %v933 = vunpack.c.l.b16 %v896
    %v934 = vunpack.c.h.b16 %v896
    %v935 = vunpack.c.l.b16 %v897
    %v936 = vunpack.c.h.b16 %v897
    %v937 = vunpack.c.l.b16 %v898
    %v938 = vunpack.c.h.b16 %v898
    %v939 = vunpack.c.l.b16 %v899
    %v940 = vunpack.c.h.b16 %v899
    %v941 = vunpack.c.l.b16 %v900
    %v942 = vunpack.c.h.b16 %v900
    %v943 = vunpack.c.l.b16 %v901
    %v944 = vunpack.c.h.b16 %v901
    %v945 = vunpack.c.l.b16 %v902
    %v946 = vunpack.c.h.b16 %v902
    %v947 = vunpack.c.l.b16 %v903
    %v948 = vunpack.c.h.b16 %v903
    %v949 = vunpack.c.l.b16 %v904
    %v950 = vunpack.c.h.b16 %v904
    %v951 = vunpack.c.l.b16 %v905
    %v952 = vunpack.c.h.b16 %v905
    %v953 = vunpack.c.l.b16 %v906
    %v954 = vunpack.c.h.b16 %v906
    %v955 = vpack.c.b16 %v925, %v923
    %v956 = vpack.c.b16 %v926, %v924
    %v957 = vpack.c.b16 %v929, %v927
    %v958 = vpack.c.b16 %v930, %v928
    %v959 = vpack.c.b16 %v933, %v931
    %v960 = vpack.c.b16 %v934, %v932
    %v961 = vpack.c.b16 %v937, %v935
    %v962 = vpack.c.b16 %v938, %v936
    %v963 = vpack.c.b16 %v941, %v939
    %v964 = vpack.c.b16 %v942, %v940
    %v965 = vpack.c.b16 %v945, %v943
    %v966 = vpack.c.b16 %v946, %v944
    %v967 = vpack.c.b16 %v949, %v947
    %v968 = vpack.c.b16 %v950, %v948
    %v969 = vpack.c.b16 %v953, %v951
    %v970 = vpack.c.b16 %v954, %v952
    %987 = vmatprep.subr.bf16.mxu0 %v956
    %988 = vmatpush1.bf16.msra.mxu0 %v955
    %989 = vmatprep.subr.bf16.mxu0 %v958
    %990 = vmatpush1.bf16.msra.mxu0 %v957
    %991 = vmatprep.subr.bf16.mxu0 %v960
    %992 = vmatpush1.bf16.msra.mxu0 %v959
    %993 = vmatprep.subr.bf16.mxu0 %v962
    %994 = vmatpush1.bf16.msra.mxu0 %v961
    %995 = vmatprep.subr.bf16.mxu0 %v964
    %996 = vmatpush1.bf16.msra.mxu0 %v963
    %997 = vmatprep.subr.bf16.mxu0 %v966
    %998 = vmatpush1.bf16.msra.mxu0 %v965
    %999 = vmatprep.subr.bf16.mxu0 %v968
    %1000 = vmatpush1.bf16.msra.mxu0 %v967
    %1001 = vmatprep.subr.bf16.mxu0 %v970
    %1002 = vmatpush1.bf16.msra.mxu0 %v969
    %1003 = vmatprep.subr.bf16.mxu0 0
    %1004 = vmatpush1.bf16.msra.mxu0 0
    %1005 = vmatprep.subr.bf16.mxu0 0
    %1006 = vmatpush1.bf16.msra.mxu0 0
    %1007 = vmatprep.subr.bf16.mxu0 0
    %1008 = vmatpush1.bf16.msra.mxu0 0
    %1009 = vmatprep.subr.bf16.mxu0 0
    %1010 = vmatpush1.bf16.msra.mxu0 0
    %1011 = vmatprep.subr.bf16.mxu0 0
    %1012 = vmatpush1.bf16.msra.mxu0 0
    %1013 = vmatprep.subr.bf16.mxu0 0
    %1014 = vmatpush1.bf16.msra.mxu0 0
    %1015 = vmatprep.subr.bf16.mxu0 0
    %1016 = vmatpush1.bf16.msra.mxu0 0
    %1017 = vmatprep.subr.bf16.mxu0 0
    %1018 = vmatpush1.bf16.msra.mxu0 0
    %1019 = vmatprep.mubr.bf16.mxu0 0
    %1020 = vmatmul.mubr.bf16.gmra.mrb[0].mxu0 %v890
    %v1021 = vpop.f32.mrb[0].mxu0
    %v1022 = vadd.f32 0.0, %v1021
    %v1023 = vpop.f32.mrb[0].mxu0
    %v1024 = vadd.f32 0.0, %v1023
    %v1025 = vpop.f32.mrb[0].mxu0
    %v1026 = vpop.f32.mrb[0].mxu0
    %1027 = vdwg.mxu0
    %v1028 = vadd.f32 %v888, %v1022
    %v1029 = vadd.f32 %v889, %v1024
    %v1030 = vmul.f32 %v1028, 0.5
    %v1031 = vmul.f32 %v1029, 0.5
    %v1032 = vsel %vm226, %v1030, %v1028
    %v1033 = vsel %vm227, %v1031, %v1029
    %v1034 = vtanh.pop %v1032
    %v1035 = vtanh.pop %v1033
    %v1036 = vmul.f32 %v1034, 0.5
    %v1037 = vmul.f32 %v1035, 0.5
    %v1038 = vadd.f32 %v1036, 0.5
    %v1039 = vadd.f32 %v1037, 0.5
    %v1040 = vsel %vm226, %v1038, %v1034
    %v1041 = vsel %vm227, %v1039, %v1035
    %1042 = vrot.lane.b32.xlu0 %v1041, 64
    %v1043 = vpop.permute.xlu0 %1042
    %v1044 = vmul.f32 %v1040, %v1043
    %v1045 = vmul.f32 %v1041, %v884
    %v1046 = vadd.f32 %v1044, %v1045
    %1047 = vrot.lane.b32.xlu0 %v1046, 64
    %v1048 = vpop.permute.xlu0 %1047
    %v1049 = vsel %vm228, %v1046, %v1048
    %v1050 = vtanh.pop %v1049
    %v1051 = vmul.f32 %v1040, %v1050
    %1052 = vst [vmem:[#allocation3 + $0x20] sm:$0xff] %v1051
    %v1053 = vld [vmem:[#allocation2 + $0x50] sm:$0xff]
    %v1054 = vld [vmem:[#allocation2 + $0x58] sm:$0xff]
    %v1055 = vpack.c.bf16 %v1051, %v1051
    %v1056 = vld [vmem:[#allocation7] sm:$0xff]
    %v1057 = vld [vmem:[#allocation7 + $0x8] sm:$0xff]
    %v1058 = vld [vmem:[#allocation7 + $0x10] sm:$0xff]
    %v1059 = vld [vmem:[#allocation7 + $0x18] sm:$0xff]
    %v1060 = vld [vmem:[#allocation7 + $0x20] sm:$0xff]
    %v1061 = vld [vmem:[#allocation7 + $0x28] sm:$0xff]
    %v1062 = vld [vmem:[#allocation7 + $0x30] sm:$0xff]
    %v1063 = vld [vmem:[#allocation7 + $0x38] sm:$0xff]
    %v1064 = vld [vmem:[#allocation7 + $0x40] sm:$0xff]
    %v1065 = vld [vmem:[#allocation7 + $0x48] sm:$0xff]
    %v1066 = vld [vmem:[#allocation7 + $0x50] sm:$0xff]
    %v1067 = vld [vmem:[#allocation7 + $0x58] sm:$0xff]
    %v1068 = vld [vmem:[#allocation7 + $0x60] sm:$0xff]
    %v1069 = vld [vmem:[#allocation7 + $0x68] sm:$0xff]
    %v1070 = vld [vmem:[#allocation7 + $0x70] sm:$0xff]
    %v1071 = vld [vmem:[#allocation7 + $0x78] sm:$0xff]
    %v1088 = vunpack.c.l.b16 %v1056
    %v1089 = vunpack.c.h.b16 %v1056
    %v1090 = vunpack.c.l.b16 %v1057
    %v1091 = vunpack.c.h.b16 %v1057
    %v1092 = vunpack.c.l.b16 %v1058
    %v1093 = vunpack.c.h.b16 %v1058
    %v1094 = vunpack.c.l.b16 %v1059
    %v1095 = vunpack.c.h.b16 %v1059
    %v1096 = vunpack.c.l.b16 %v1060
    %v1097 = vunpack.c.h.b16 %v1060
    %v1098 = vunpack.c.l.b16 %v1061
    %v1099 = vunpack.c.h.b16 %v1061
    %v1100 = vunpack.c.l.b16 %v1062
    %v1101 = vunpack.c.h.b16 %v1062
    %v1102 = vunpack.c.l.b16 %v1063
    %v1103 = vunpack.c.h.b16 %v1063
    %v1104 = vunpack.c.l.b16 %v1064
    %v1105 = vunpack.c.h.b16 %v1064
    %v1106 = vunpack.c.l.b16 %v1065
    %v1107 = vunpack.c.h.b16 %v1065
    %v1108 = vunpack.c.l.b16 %v1066
    %v1109 = vunpack.c.h.b16 %v1066
    %v1110 = vunpack.c.l.b16 %v1067
    %v1111 = vunpack.c.h.b16 %v1067
    %v1112 = vunpack.c.l.b16 %v1068
    %v1113 = vunpack.c.h.b16 %v1068
    %v1114 = vunpack.c.l.b16 %v1069
    %v1115 = vunpack.c.h.b16 %v1069
    %v1116 = vunpack.c.l.b16 %v1070
    %v1117 = vunpack.c.h.b16 %v1070
    %v1118 = vunpack.c.l.b16 %v1071
    %v1119 = vunpack.c.h.b16 %v1071
    %v1120 = vpack.c.b16 %v1090, %v1088
    %v1121 = vpack.c.b16 %v1091, %v1089
    %v1122 = vpack.c.b16 %v1094, %v1092
    %v1123 = vpack.c.b16 %v1095, %v1093
    %v1124 = vpack.c.b16 %v1098, %v1096
    %v1125 = vpack.c.b16 %v1099, %v1097
    %v1126 = vpack.c.b16 %v1102, %v1100
    %v1127 = vpack.c.b16 %v1103, %v1101
    %v1128 = vpack.c.b16 %v1106, %v1104
    %v1129 = vpack.c.b16 %v1107, %v1105
    %v1130 = vpack.c.b16 %v1110, %v1108
    %v1131 = vpack.c.b16 %v1111, %v1109
    %v1132 = vpack.c.b16 %v1114, %v1112
    %v1133 = vpack.c.b16 %v1115, %v1113
    %v1134 = vpack.c.b16 %v1118, %v1116
    %v1135 = vpack.c.b16 %v1119, %v1117
    %1152 = vmatprep.subr.bf16.mxu0 %v1121
    %1153 = vmatpush1.bf16.msra.mxu0 %v1120
    %1154 = vmatprep.subr.bf16.mxu0 %v1123
    %1155 = vmatpush1.bf16.msra.mxu0 %v1122
    %1156 = vmatprep.subr.bf16.mxu0 %v1125
    %1157 = vmatpush1.bf16.msra.mxu0 %v1124
    %1158 = vmatprep.subr.bf16.mxu0 %v1127
    %1159 = vmatpush1.bf16.msra.mxu0 %v1126
    %1160 = vmatprep.subr.bf16.mxu0 %v1129
    %1161 = vmatpush1.bf16.msra.mxu0 %v1128
    %1162 = vmatprep.subr.bf16.mxu0 %v1131
    %1163 = vmatpush1.bf16.msra.mxu0 %v1130
    %1164 = vmatprep.subr.bf16.mxu0 %v1133
    %1165 = vmatpush1.bf16.msra.mxu0 %v1132
    %1166 = vmatprep.subr.bf16.mxu0 %v1135
    %1167 = vmatpush1.bf16.msra.mxu0 %v1134
    %1168 = vmatprep.subr.bf16.mxu0 0
    %1169 = vmatpush1.bf16.msra.mxu0 0
    %1170 = vmatprep.subr.bf16.mxu0 0
    %1171 = vmatpush1.bf16.msra.mxu0 0
    %1172 = vmatprep.subr.bf16.mxu0 0
    %1173 = vmatpush1.bf16.msra.mxu0 0
    %1174 = vmatprep.subr.bf16.mxu0 0
    %1175 = vmatpush1.bf16.msra.mxu0 0
    %1176 = vmatprep.subr.bf16.mxu0 0
    %1177 = vmatpush1.bf16.msra.mxu0 0
    %1178 = vmatprep.subr.bf16.mxu0 0
    %1179 = vmatpush1.bf16.msra.mxu0 0
    %1180 = vmatprep.subr.bf16.mxu0 0
    %1181 = vmatpush1.bf16.msra.mxu0 0
    %1182 = vmatprep.subr.bf16.mxu0 0
    %1183 = vmatpush1.bf16.msra.mxu0 0
    %1184 = vmatprep.mubr.bf16.mxu0 0
    %1185 = vmatmul.mubr.bf16.gmra.mrb[0].mxu0 %v1055
    %v1186 = vpop.f32.mrb[0].mxu0
    %v1187 = vadd.f32 0.0, %v1186
    %v1188 = vpop.f32.mrb[0].mxu0
    %v1189 = vadd.f32 0.0, %v1188
    %v1190 = vpop.f32.mrb[0].mxu0
    %v1191 = vpop.f32.mrb[0].mxu0
    %1192 = vdwg.mxu0
    %v1193 = vadd.f32 %v1053, %v1187
    %v1194 = vadd.f32 %v1054, %v1189
    %v1195 = vmul.f32 %v1193, 0.5
    %v1196 = vmul.f32 %v1194, 0.5
    %v1197 = vsel %vm226, %v1195, %v1193
    %v1198 = vsel %vm227, %v1196, %v1194
    %v1199 = vtanh.pop %v1197
    %v1200 = vtanh.pop %v1198
    %v1201 = vmul.f32 %v1199, 0.5
    %v1202 = vmul.f32 %v1200, 0.5
    %v1203 = vadd.f32 %v1201, 0.5
    %v1204 = vadd.f32 %v1202, 0.5
    %v1205 = vsel %vm226, %v1203, %v1199
    %v1206 = vsel %vm227, %v1204, %v1200
    %1207 = vrot.lane.b32.xlu0 %v1206, 64
    %v1208 = vpop.permute.xlu0 %1207
    %v1209 = vmul.f32 %v1205, %v1208
    %v1210 = vmul.f32 %v1206, %v1049
    %v1211 = vadd.f32 %v1209, %v1210
    %1212 = vrot.lane.b32.xlu0 %v1211, 64
    %v1213 = vpop.permute.xlu0 %1212
    %v1214 = vsel %vm228, %v1211, %v1213
    %v1215 = vtanh.pop %v1214
    %v1216 = vmul.f32 %v1205, %v1215
    %1217 = vst [vmem:[#allocation3 + $0x28] sm:$0xff] %v1216
    %v1218 = vld [vmem:[#allocation2 + $0x60] sm:$0xff]
    %v1219 = vld [vmem:[#allocation2 + $0x68] sm:$0xff]
    %v1220 = vpack.c.bf16 %v1216, %v1216
    %v1221 = vld [vmem:[#allocation7] sm:$0xff]
    %v1222 = vld [vmem:[#allocation7 + $0x8] sm:$0xff]
    %v1223 = vld [vmem:[#allocation7 + $0x10] sm:$0xff]
    %v1224 = vld [vmem:[#allocation7 + $0x18] sm:$0xff]
    %v1225 = vld [vmem:[#allocation7 + $0x20] sm:$0xff]
    %v1226 = vld [vmem:[#allocation7 + $0x28] sm:$0xff]
    %v1227 = vld [vmem:[#allocation7 + $0x30] sm:$0xff]
    %v1228 = vld [vmem:[#allocation7 + $0x38] sm:$0xff]
    %v1229 = vld [vmem:[#allocation7 + $0x40] sm:$0xff]
    %v1230 = vld [vmem:[#allocation7 + $0x48] sm:$0xff]
    %v1231 = vld [vmem:[#allocation7 + $0x50] sm:$0xff]
    %v1232 = vld [vmem:[#allocation7 + $0x58] sm:$0xff]
    %v1233 = vld [vmem:[#allocation7 + $0x60] sm:$0xff]
    %v1234 = vld [vmem:[#allocation7 + $0x68] sm:$0xff]
    %v1235 = vld [vmem:[#allocation7 + $0x70] sm:$0xff]
    %v1236 = vld [vmem:[#allocation7 + $0x78] sm:$0xff]
    %v1253 = vunpack.c.l.b16 %v1221
    %v1254 = vunpack.c.h.b16 %v1221
    %v1255 = vunpack.c.l.b16 %v1222
    %v1256 = vunpack.c.h.b16 %v1222
    %v1257 = vunpack.c.l.b16 %v1223
    %v1258 = vunpack.c.h.b16 %v1223
    %v1259 = vunpack.c.l.b16 %v1224
    %v1260 = vunpack.c.h.b16 %v1224
    %v1261 = vunpack.c.l.b16 %v1225
    %v1262 = vunpack.c.h.b16 %v1225
    %v1263 = vunpack.c.l.b16 %v1226
    %v1264 = vunpack.c.h.b16 %v1226
    %v1265 = vunpack.c.l.b16 %v1227
    %v1266 = vunpack.c.h.b16 %v1227
    %v1267 = vunpack.c.l.b16 %v1228
    %v1268 = vunpack.c.h.b16 %v1228
    %v1269 = vunpack.c.l.b16 %v1229
    %v1270 = vunpack.c.h.b16 %v1229
    %v1271 = vunpack.c.l.b16 %v1230
    %v1272 = vunpack.c.h.b16 %v1230
    %v1273 = vunpack.c.l.b16 %v1231
    %v1274 = vunpack.c.h.b16 %v1231
    %v1275 = vunpack.c.l.b16 %v1232
    %v1276 = vunpack.c.h.b16 %v1232
    %v1277 = vunpack.c.l.b16 %v1233
    %v1278 = vunpack.c.h.b16 %v1233
    %v1279 = vunpack.c.l.b16 %v1234
    %v1280 = vunpack.c.h.b16 %v1234
    %v1281 = vunpack.c.l.b16 %v1235
    %v1282 = vunpack.c.h.b16 %v1235
    %v1283 = vunpack.c.l.b16 %v1236
    %v1284 = vunpack.c.h.b16 %v1236
    %v1285 = vpack.c.b16 %v1255, %v1253
    %v1286 = vpack.c.b16 %v1256, %v1254
    %v1287 = vpack.c.b16 %v1259, %v1257
    %v1288 = vpack.c.b16 %v1260, %v1258
    %v1289 = vpack.c.b16 %v1263, %v1261
    %v1290 = vpack.c.b16 %v1264, %v1262
    %v1291 = vpack.c.b16 %v1267, %v1265
    %v1292 = vpack.c.b16 %v1268, %v1266
    %v1293 = vpack.c.b16 %v1271, %v1269
    %v1294 = vpack.c.b16 %v1272, %v1270
    %v1295 = vpack.c.b16 %v1275, %v1273
    %v1296 = vpack.c.b16 %v1276, %v1274
    %v1297 = vpack.c.b16 %v1279, %v1277
    %v1298 = vpack.c.b16 %v1280, %v1278
    %v1299 = vpack.c.b16 %v1283, %v1281
    %v1300 = vpack.c.b16 %v1284, %v1282
    %1317 = vmatprep.subr.bf16.mxu0 %v1286
    %1318 = vmatpush1.bf16.msra.mxu0 %v1285
    %1319 = vmatprep.subr.bf16.mxu0 %v1288
    %1320 = vmatpush1.bf16.msra.mxu0 %v1287
    %1321 = vmatprep.subr.bf16.mxu0 %v1290
    %1322 = vmatpush1.bf16.msra.mxu0 %v1289
    %1323 = vmatprep.subr.bf16.mxu0 %v1292
    %1324 = vmatpush1.bf16.msra.mxu0 %v1291
    %1325 = vmatprep.subr.bf16.mxu0 %v1294
    %1326 = vmatpush1.bf16.msra.mxu0 %v1293
    %1327 = vmatprep.subr.bf16.mxu0 %v1296
    %1328 = vmatpush1.bf16.msra.mxu0 %v1295
    %1329 = vmatprep.subr.bf16.mxu0 %v1298
    %1330 = vmatpush1.bf16.msra.mxu0 %v1297
    %1331 = vmatprep.subr.bf16.mxu0 %v1300
    %1332 = vmatpush1.bf16.msra.mxu0 %v1299
    %1333 = vmatprep.subr.bf16.mxu0 0
    %1334 = vmatpush1.bf16.msra.mxu0 0
    %1335 = vmatprep.subr.bf16.mxu0 0
    %1336 = vmatpush1.bf16.msra.mxu0 0
    %1337 = vmatprep.subr.bf16.mxu0 0
    %1338 = vmatpush1.bf16.msra.mxu0 0
    %1339 = vmatprep.subr.bf16.mxu0 0
    %1340 = vmatpush1.bf16.msra.mxu0 0
    %1341 = vmatprep.subr.bf16.mxu0 0
    %1342 = vmatpush1.bf16.msra.mxu0 0
    %1343 = vmatprep.subr.bf16.mxu0 0
    %1344 = vmatpush1.bf16.msra.mxu0 0
    %1345 = vmatprep.subr.bf16.mxu0 0
    %1346 = vmatpush1.bf16.msra.mxu0 0
    %1347 = vmatprep.subr.bf16.mxu0 0
    %1348 = vmatpush1.bf16.msra.mxu0 0
    %1349 = vmatprep.mubr.bf16.mxu0 0
    %1350 = vmatmul.mubr.bf16.gmra.mrb[0].mxu0 %v1220
    %v1351 = vpop.f32.mrb[0].mxu0
    %v1352 = vadd.f32 0.0, %v1351
    %v1353 = vpop.f32.mrb[0].mxu0
    %v1354 = vadd.f32 0.0, %v1353
    %v1355 = vpop.f32.mrb[0].mxu0
    %v1356 = vpop.f32.mrb[0].mxu0
    %1357 = vdwg.mxu0
    %v1358 = vadd.f32 %v1218, %v1352
    %v1359 = vadd.f32 %v1219, %v1354
    %v1360 = vmul.f32 %v1358, 0.5
    %v1361 = vmul.f32 %v1359, 0.5
    %v1362 = vsel %vm226, %v1360, %v1358
    %v1363 = vsel %vm227, %v1361, %v1359
    %v1364 = vtanh.pop %v1362
    %v1365 = vtanh.pop %v1363
    %v1366 = vmul.f32 %v1364, 0.5
    %v1367 = vmul.f32 %v1365, 0.5
    %v1368 = vadd.f32 %v1366, 0.5
    %v1369 = vadd.f32 %v1367, 0.5
    %v1370 = vsel %vm226, %v1368, %v1364
    %v1371 = vsel %vm227, %v1369, %v1365
    %1372 = vrot.lane.b32.xlu0 %v1371, 64
    %v1373 = vpop.permute.xlu0 %1372
    %v1374 = vmul.f32 %v1370, %v1373
    %v1375 = vmul.f32 %v1371, %v1214
    %v1376 = vadd.f32 %v1374, %v1375
    %1377 = vrot.lane.b32.xlu0 %v1376, 64
    %v1378 = vpop.permute.xlu0 %1377
    %v1379 = vsel %vm228, %v1376, %v1378
    %v1380 = vtanh.pop %v1379
    %v1381 = vmul.f32 %v1370, %v1380
    %1382 = vst [vmem:[#allocation3 + $0x30] sm:$0xff] %v1381
    %v1383 = vld [vmem:[#allocation2 + $0x70] sm:$0xff]
    %v1384 = vld [vmem:[#allocation2 + $0x78] sm:$0xff]
    %v1385 = vpack.c.bf16 %v1381, %v1381
    %v1386 = vld [vmem:[#allocation7] sm:$0xff]
    %v1387 = vld [vmem:[#allocation7 + $0x8] sm:$0xff]
    %v1388 = vld [vmem:[#allocation7 + $0x10] sm:$0xff]
    %v1389 = vld [vmem:[#allocation7 + $0x18] sm:$0xff]
    %v1390 = vld [vmem:[#allocation7 + $0x20] sm:$0xff]
    %v1391 = vld [vmem:[#allocation7 + $0x28] sm:$0xff]
    %v1392 = vld [vmem:[#allocation7 + $0x30] sm:$0xff]
    %v1393 = vld [vmem:[#allocation7 + $0x38] sm:$0xff]
    %v1394 = vld [vmem:[#allocation7 + $0x40] sm:$0xff]
    %v1395 = vld [vmem:[#allocation7 + $0x48] sm:$0xff]
    %v1396 = vld [vmem:[#allocation7 + $0x50] sm:$0xff]
    %v1397 = vld [vmem:[#allocation7 + $0x58] sm:$0xff]
    %v1398 = vld [vmem:[#allocation7 + $0x60] sm:$0xff]
    %v1399 = vld [vmem:[#allocation7 + $0x68] sm:$0xff]
    %v1400 = vld [vmem:[#allocation7 + $0x70] sm:$0xff]
    %v1401 = vld [vmem:[#allocation7 + $0x78] sm:$0xff]
    %v1418 = vunpack.c.l.b16 %v1386
    %v1419 = vunpack.c.h.b16 %v1386
    %v1420 = vunpack.c.l.b16 %v1387
    %v1421 = vunpack.c.h.b16 %v1387
    %v1422 = vunpack.c.l.b16 %v1388
    %v1423 = vunpack.c.h.b16 %v1388
    %v1424 = vunpack.c.l.b16 %v1389
    %v1425 = vunpack.c.h.b16 %v1389
    %v1426 = vunpack.c.l.b16 %v1390
    %v1427 = vunpack.c.h.b16 %v1390
    %v1428 = vunpack.c.l.b16 %v1391
    %v1429 = vunpack.c.h.b16 %v1391
    %v1430 = vunpack.c.l.b16 %v1392
    %v1431 = vunpack.c.h.b16 %v1392
    %v1432 = vunpack.c.l.b16 %v1393
    %v1433 = vunpack.c.h.b16 %v1393
    %v1434 = vunpack.c.l.b16 %v1394
    %v1435 = vunpack.c.h.b16 %v1394
    %v1436 = vunpack.c.l.b16 %v1395
    %v1437 = vunpack.c.h.b16 %v1395
    %v1438 = vunpack.c.l.b16 %v1396
    %v1439 = vunpack.c.h.b16 %v1396
    %v1440 = vunpack.c.l.b16 %v1397
    %v1441 = vunpack.c.h.b16 %v1397
    %v1442 = vunpack.c.l.b16 %v1398
    %v1443 = vunpack.c.h.b16 %v1398
    %v1444 = vunpack.c.l.b16 %v1399
    %v1445 = vunpack.c.h.b16 %v1399
    %v1446 = vunpack.c.l.b16 %v1400
    %v1447 = vunpack.c.h.b16 %v1400
    %v1448 = vunpack.c.l.b16 %v1401
    %v1449 = vunpack.c.h.b16 %v1401
    %v1450 = vpack.c.b16 %v1420, %v1418
    %v1451 = vpack.c.b16 %v1421, %v1419
    %v1452 = vpack.c.b16 %v1424, %v1422
    %v1453 = vpack.c.b16 %v1425, %v1423
    %v1454 = vpack.c.b16 %v1428, %v1426
    %v1455 = vpack.c.b16 %v1429, %v1427
    %v1456 = vpack.c.b16 %v1432, %v1430
    %v1457 = vpack.c.b16 %v1433, %v1431
    %v1458 = vpack.c.b16 %v1436, %v1434
    %v1459 = vpack.c.b16 %v1437, %v1435
    %v1460 = vpack.c.b16 %v1440, %v1438
    %v1461 = vpack.c.b16 %v1441, %v1439
    %v1462 = vpack.c.b16 %v1444, %v1442
    %v1463 = vpack.c.b16 %v1445, %v1443
    %v1464 = vpack.c.b16 %v1448, %v1446
    %v1465 = vpack.c.b16 %v1449, %v1447
    %1482 = vmatprep.subr.bf16.mxu0 %v1451
    %1483 = vmatpush1.bf16.msra.mxu0 %v1450
    %1484 = vmatprep.subr.bf16.mxu0 %v1453
    %1485 = vmatpush1.bf16.msra.mxu0 %v1452
    %1486 = vmatprep.subr.bf16.mxu0 %v1455
    %1487 = vmatpush1.bf16.msra.mxu0 %v1454
    %1488 = vmatprep.subr.bf16.mxu0 %v1457
    %1489 = vmatpush1.bf16.msra.mxu0 %v1456
    %1490 = vmatprep.subr.bf16.mxu0 %v1459
    %1491 = vmatpush1.bf16.msra.mxu0 %v1458
    %1492 = vmatprep.subr.bf16.mxu0 %v1461
    %1493 = vmatpush1.bf16.msra.mxu0 %v1460
    %1494 = vmatprep.subr.bf16.mxu0 %v1463
    %1495 = vmatpush1.bf16.msra.mxu0 %v1462
    %1496 = vmatprep.subr.bf16.mxu0 %v1465
    %1497 = vmatpush1.bf16.msra.mxu0 %v1464
    %1498 = vmatprep.subr.bf16.mxu0 0
    %1499 = vmatpush1.bf16.msra.mxu0 0
    %1500 = vmatprep.subr.bf16.mxu0 0
    %1501 = vmatpush1.bf16.msra.mxu0 0
    %1502 = vmatprep.subr.bf16.mxu0 0
    %1503 = vmatpush1.bf16.msra.mxu0 0
    %1504 = vmatprep.subr.bf16.mxu0 0
    %1505 = vmatpush1.bf16.msra.mxu0 0
    %1506 = vmatprep.subr.bf16.mxu0 0
    %1507 = vmatpush1.bf16.msra.mxu0 0
    %1508 = vmatprep.subr.bf16.mxu0 0
    %1509 = vmatpush1.bf16.msra.mxu0 0
    %1510 = vmatprep.subr.bf16.mxu0 0
    %1511 = vmatpush1.bf16.msra.mxu0 0
    %1512 = vmatprep.subr.bf16.mxu0 0
    %1513 = vmatpush1.bf16.msra.mxu0 0
    %1514 = vmatprep.mubr.bf16.mxu0 0
    %1515 = vmatmul.mubr.bf16.gmra.mrb[0].mxu0 %v1385
    %v1516 = vpop.f32.mrb[0].mxu0
    %v1517 = vadd.f32 0.0, %v1516
    %v1518 = vpop.f32.mrb[0].mxu0
    %v1519 = vadd.f32 0.0, %v1518
    %v1520 = vpop.f32.mrb[0].mxu0
    %v1521 = vpop.f32.mrb[0].mxu0
    %1522 = vdwg.mxu0
    %v1523 = vadd.f32 %v1383, %v1517
    %v1524 = vadd.f32 %v1384, %v1519
    %v1525 = vmul.f32 %v1523, 0.5
    %v1526 = vmul.f32 %v1524, 0.5
    %v1527 = vsel %vm226, %v1525, %v1523
    %v1528 = vsel %vm227, %v1526, %v1524
    %v1529 = vtanh.pop %v1527
    %v1530 = vtanh.pop %v1528
    %v1531 = vmul.f32 %v1529, 0.5
    %v1532 = vmul.f32 %v1530, 0.5
    %v1533 = vadd.f32 %v1531, 0.5
    %v1534 = vadd.f32 %v1532, 0.5
    %v1535 = vsel %vm226, %v1533, %v1529
    %v1536 = vsel %vm227, %v1534, %v1530
    %1537 = vrot.lane.b32.xlu0 %v1536, 64
    %v1538 = vpop.permute.xlu0 %1537
    %v1539 = vmul.f32 %v1535, %v1538
    %v1540 = vmul.f32 %v1536, %v1379
    %v1541 = vadd.f32 %v1539, %v1540
    %1542 = vrot.lane.b32.xlu0 %v1541, 64
    %v1543 = vpop.permute.xlu0 %1542
    %v1544 = vsel %vm228, %v1541, %v1543
    %v1545 = vtanh.pop %v1544
    %v1546 = vmul.f32 %v1535, %v1545
    %1547 = vst [vmem:[#allocation3 + $0x38] sm:$0xff] %v1546
    %v1548 = vld [vmem:[#allocation3] sm:$0xff]
    %v1549 = vld [vmem:[#allocation3 + $0x8] sm:$0xff]
    %v1550 = vld [vmem:[#allocation3 + $0x10] sm:$0xff]
    %v1551 = vld [vmem:[#allocation3 + $0x18] sm:$0xff]
    %v1552 = vld [vmem:[#allocation3 + $0x20] sm:$0xff]
    %v1553 = vld [vmem:[#allocation3 + $0x28] sm:$0xff]
    %v1554 = vld [vmem:[#allocation3 + $0x30] sm:$0xff]
    %v1555 = vld [vmem:[#allocation3 + $0x38] sm:$0xff]
    %v1556 = vmax.f32 %v1548, 0.0
    %v1557 = vmax.f32 %v1549, 0.0
    %v1558 = vmax.f32 %v1550, 0.0
    %v1559 = vmax.f32 %v1551, 0.0
    %v1560 = vmax.f32 %v1552, 0.0
    %v1561 = vmax.f32 %v1553, 0.0
    %v1562 = vmax.f32 %v1554, 0.0
    %v1563 = vmax.f32 %v1555, 0.0
    %v1564 = vpack.c.bf16 %v1557, %v1556
    %v1565 = vpack.c.bf16 %v1559, %v1558
    %v1566 = vpack.c.bf16 %v1561, %v1560
    %v1567 = vpack.c.bf16 %v1563, %v1562
    %v1568 = vld [vmem:[#allocation9] sm:$0xf]
    %v1569 = vld [vmem:[#allocation9 + $0x4] sm:$0xf]
    %v1570 = vld [vmem:[#allocation9 + $0x8] sm:$0xf]
    %v1571 = vld [vmem:[#allocation9 + $0xc] sm:$0xf]
    %v1572 = vld [vmem:[#allocation9 + $0x10] sm:$0xf]
    %v1573 = vld [vmem:[#allocation9 + $0x14] sm:$0xf]
    %v1574 = vld [vmem:[#allocation9 + $0x18] sm:$0xf]
    %v1575 = vld [vmem:[#allocation9 + $0x1c] sm:$0xf]
    %v1576 = vld [vmem:[#allocation9 + $0x20] sm:$0xf]
    %v1577 = vld [vmem:[#allocation9 + $0x24] sm:$0xf]
    %v1578 = vld [vmem:[#allocation9 + $0x28] sm:$0xf]
    %v1579 = vld [vmem:[#allocation9 + $0x2c] sm:$0xf]
    %v1580 = vld [vmem:[#allocation9 + $0x30] sm:$0xf]
    %v1581 = vld [vmem:[#allocation9 + $0x34] sm:$0xf]
    %v1582 = vld [vmem:[#allocation9 + $0x38] sm:$0xf]
    %v1583 = vld [vmem:[#allocation9 + $0x3c] sm:$0xf]
    %v1584 = vld [vmem:[%s4] sm:$0x1]
    %v1586 = vlaneseq
    %v1587 = vshrl.u32 %v1586, 7
    %v1588 = vsub.s32 0, %v1587
    %v1589 = vrot.slane %v1584, %v1588
    %v1607 = vunpack.c.l.b16 %v1568
    %v1608 = vunpack.c.l.b16 %v1569
    %v1609 = vunpack.c.l.b16 %v1570
    %v1610 = vunpack.c.l.b16 %v1571
    %v1611 = vunpack.c.l.b16 %v1572
    %v1612 = vunpack.c.l.b16 %v1573
    %v1613 = vunpack.c.l.b16 %v1574
    %v1614 = vunpack.c.l.b16 %v1575
    %v1615 = vunpack.c.l.b16 %v1576
    %v1616 = vunpack.c.l.b16 %v1577
    %v1617 = vunpack.c.l.b16 %v1578
    %v1618 = vunpack.c.l.b16 %v1579
    %v1619 = vunpack.c.l.b16 %v1580
    %v1620 = vunpack.c.l.b16 %v1581
    %v1621 = vunpack.c.l.b16 %v1582
    %v1622 = vunpack.c.l.b16 %v1583
    %v1623 = vpack.c.b16 %v1608, %v1607
    %v1624 = vpack.c.b16 %v1610, %v1609
    %v1625 = vpack.c.b16 %v1612, %v1611
    %v1626 = vpack.c.b16 %v1614, %v1613
    %v1627 = vpack.c.b16 %v1616, %v1615
    %v1628 = vpack.c.b16 %v1618, %v1617
    %v1629 = vpack.c.b16 %v1620, %v1619
    %v1630 = vpack.c.b16 %v1622, %v1621
    %1639 = vmatprep.subr.bf16.mxu0 0
    %1640 = vmatpush1.bf16.msra.mxu0 %v1623
    %1641 = vmatprep.subr.bf16.mxu0 0
    %1642 = vmatpush1.bf16.msra.mxu0 %v1624
    %1643 = vmatprep.subr.bf16.mxu0 0
    %1644 = vmatpush1.bf16.msra.mxu0 %v1625
    %1645 = vmatprep.subr.bf16.mxu0 0
    %1646 = vmatpush1.bf16.msra.mxu0 %v1626
    %1647 = vmatprep.subr.bf16.mxu0 0
    %1648 = vmatpush1.bf16.msra.mxu0 %v1627
    %1649 = vmatprep.subr.bf16.mxu0 0
    %1650 = vmatpush1.bf16.msra.mxu0 %v1628
    %1651 = vmatprep.subr.bf16.mxu0 0
    %1652 = vmatpush1.bf16.msra.mxu0 %v1629
    %1653 = vmatprep.subr.bf16.mxu0 0
    %1654 = vmatpush1.bf16.msra.mxu0 %v1630
    %1655 = vmatprep.subr.bf16.mxu0 0
    %1656 = vmatpush1.bf16.msra.mxu0 0
    %1657 = vmatprep.subr.bf16.mxu0 0
    %1658 = vmatpush1.bf16.msra.mxu0 0
    %1659 = vmatprep.subr.bf16.mxu0 0
    %1660 = vmatpush1.bf16.msra.mxu0 0
    %1661 = vmatprep.subr.bf16.mxu0 0
    %1662 = vmatpush1.bf16.msra.mxu0 0
    %1663 = vmatprep.subr.bf16.mxu0 0
    %1664 = vmatpush1.bf16.msra.mxu0 0
    %1665 = vmatprep.subr.bf16.mxu0 0
    %1666 = vmatpush1.bf16.msra.mxu0 0
    %1667 = vmatprep.subr.bf16.mxu0 0
    %1668 = vmatpush1.bf16.msra.mxu0 0
    %1669 = vmatprep.subr.bf16.mxu0 0
    %1670 = vmatpush1.bf16.msra.mxu0 0
    %1671 = vmatprep.mubr.bf16.mxu0 0
    %1672 = vmatmul.mubr.bf16.gmra.mrb[0].mxu0 %v1564
    %v1673 = vpop.f32.mrb[0].mxu0
    %v1674 = vadd.f32 %v1589, %v1673
    %v1675 = vpop.f32.mrb[0].mxu0
    %v1676 = vpop.f32.mrb[0].mxu0
    %v1677 = vadd.f32 %v1589, %v1676
    %v1678 = vpop.f32.mrb[0].mxu0
    %1679 = vmatprep.mubr.bf16.mxu0 0
    %1680 = vmatmul.mubr.bf16.gmra.mrb[0].mxu0 %v1565
    %v1681 = vpop.f32.mrb[0].mxu0
    %v1682 = vadd.f32 %v1589, %v1681
    %v1683 = vpop.f32.mrb[0].mxu0
    %v1684 = vpop.f32.mrb[0].mxu0
    %v1685 = vadd.f32 %v1589, %v1684
    %v1686 = vpop.f32.mrb[0].mxu0
    %1687 = vmatprep.mubr.bf16.mxu0 0
    %1688 = vmatmul.mubr.bf16.gmra.mrb[0].mxu0 %v1566
    %v1689 = vpop.f32.mrb[0].mxu0
    %v1690 = vadd.f32 %v1589, %v1689
    %v1691 = vpop.f32.mrb[0].mxu0
    %v1692 = vpop.f32.mrb[0].mxu0
    %v1693 = vadd.f32 %v1589, %v1692
    %v1694 = vpop.f32.mrb[0].mxu0
    %1695 = vmatprep.mubr.bf16.mxu0 0
    %1696 = vmatmul.mubr.bf16.gmra.mrb[0].mxu0 %v1567
    %v1697 = vpop.f32.mrb[0].mxu0
    %v1698 = vadd.f32 %v1589, %v1697
    %v1699 = vpop.f32.mrb[0].mxu0
    %v1700 = vpop.f32.mrb[0].mxu0
    %v1701 = vadd.f32 %v1589, %v1700
    %v1702 = vpop.f32.mrb[0].mxu0
    %1703 = vdwg.mxu0
    %v1704 = vmax.f32 %v1674, 0.0
    %v1705 = vmax.f32 %v1677, 0.0
    %v1706 = vmax.f32 %v1682, 0.0
    %v1707 = vmax.f32 %v1685, 0.0
    %v1708 = vmax.f32 %v1690, 0.0
    %v1709 = vmax.f32 %v1693, 0.0
    %v1710 = vmax.f32 %v1698, 0.0
    %v1711 = vmax.f32 %v1701, 0.0
    %v1712 = vpack.c.bf16 %v1705, %v1704
    %v1713 = vpack.c.bf16 %v1707, %v1706
    %v1714 = vpack.c.bf16 %v1709, %v1708
    %v1715 = vpack.c.bf16 %v1711, %v1710
    %v1716 = vld [vmem:[%s5] sm:$0xf]
    %v1717 = vld [vmem:[%s5 + $0x4] sm:$0xf]
    %v1718 = vld [vmem:[%s5 + $0x8] sm:$0xf]
    %v1719 = vld [vmem:[%s5 + $0xc] sm:$0xf]
    %v1720 = vld [vmem:[%s5 + $0x10] sm:$0xf]
    %v1721 = vld [vmem:[%s5 + $0x14] sm:$0xf]
    %v1722 = vld [vmem:[%s5 + $0x18] sm:$0xf]
    %v1723 = vld [vmem:[%s5 + $0x1c] sm:$0xf]
    %v1724 = vld [vmem:[%s5 + $0x20] sm:$0xf]
    %v1725 = vld [vmem:[%s5 + $0x24] sm:$0xf]
    %v1726 = vld [vmem:[%s5 + $0x28] sm:$0xf]
    %v1727 = vld [vmem:[%s5 + $0x2c] sm:$0xf]
    %v1728 = vld [vmem:[%s5 + $0x30] sm:$0xf]
    %v1729 = vld [vmem:[%s5 + $0x34] sm:$0xf]
    %v1730 = vld [vmem:[%s5 + $0x38] sm:$0xf]
    %v1731 = vld [vmem:[%s5 + $0x3c] sm:$0xf]
    %v1732 = vld [vmem:[%s6] sm:$0x1]
    %v1734 = vlaneseq
    %v1735 = vshrl.u32 %v1734, 7
    %v1736 = vsub.s32 0, %v1735
    %v1737 = vrot.slane %v1732, %v1736
    %v1755 = vunpack.c.l.b16 %v1716
    %v1756 = vunpack.c.l.b16 %v1717
    %v1757 = vunpack.c.l.b16 %v1718
    %v1758 = vunpack.c.l.b16 %v1719
    %v1759 = vunpack.c.l.b16 %v1720
    %v1760 = vunpack.c.l.b16 %v1721
    %v1761 = vunpack.c.l.b16 %v1722
    %v1762 = vunpack.c.l.b16 %v1723
    %v1763 = vunpack.c.l.b16 %v1724
    %v1764 = vunpack.c.l.b16 %v1725
    %v1765 = vunpack.c.l.b16 %v1726
    %v1766 = vunpack.c.l.b16 %v1727
    %v1767 = vunpack.c.l.b16 %v1728
    %v1768 = vunpack.c.l.b16 %v1729
    %v1769 = vunpack.c.l.b16 %v1730
    %v1770 = vunpack.c.l.b16 %v1731
    %v1771 = vpack.c.b16 %v1756, %v1755
    %v1772 = vpack.c.b16 %v1758, %v1757
    %v1773 = vpack.c.b16 %v1760, %v1759
    %v1774 = vpack.c.b16 %v1762, %v1761
    %v1775 = vpack.c.b16 %v1764, %v1763
    %v1776 = vpack.c.b16 %v1766, %v1765
    %v1777 = vpack.c.b16 %v1768, %v1767
    %v1778 = vpack.c.b16 %v1770, %v1769
    %1787 = vmatprep.subr.bf16.mxu0 0
    %1788 = vmatpush1.bf16.msra.mxu0 %v1771
    %1789 = vmatprep.subr.bf16.mxu0 0
    %1790 = vmatpush1.bf16.msra.mxu0 %v1772
    %1791 = vmatprep.subr.bf16.mxu0 0
    %1792 = vmatpush1.bf16.msra.mxu0 %v1773
    %1793 = vmatprep.subr.bf16.mxu0 0
    %1794 = vmatpush1.bf16.msra.mxu0 %v1774
    %1795 = vmatprep.subr.bf16.mxu0 0
    %1796 = vmatpush1.bf16.msra.mxu0 %v1775
    %1797 = vmatprep.subr.bf16.mxu0 0
    %1798 = vmatpush1.bf16.msra.mxu0 %v1776
    %1799 = vmatprep.subr.bf16.mxu0 0
    %1800 = vmatpush1.bf16.msra.mxu0 %v1777
    %1801 = vmatprep.subr.bf16.mxu0 0
    %1802 = vmatpush1.bf16.msra.mxu0 %v1778
    %1803 = vmatprep.subr.bf16.mxu0 0
    %1804 = vmatpush1.bf16.msra.mxu0 0
    %1805 = vmatprep.subr.bf16.mxu0 0
    %1806 = vmatpush1.bf16.msra.mxu0 0
    %1807 = vmatprep.subr.bf16.mxu0 0
    %1808 = vmatpush1.bf16.msra.mxu0 0
    %1809 = vmatprep.subr.bf16.mxu0 0
    %1810 = vmatpush1.bf16.msra.mxu0 0
    %1811 = vmatprep.subr.bf16.mxu0 0
    %1812 = vmatpush1.bf16.msra.mxu0 0
    %1813 = vmatprep.subr.bf16.mxu0 0
    %1814 = vmatpush1.bf16.msra.mxu0 0
    %1815 = vmatprep.subr.bf16.mxu0 0
    %1816 = vmatpush1.bf16.msra.mxu0 0
    %1817 = vmatprep.subr.bf16.mxu0 0
    %1818 = vmatpush1.bf16.msra.mxu0 0
    %1819 = vmatprep.mubr.bf16.mxu0 0
    %1820 = vmatmul.mubr.bf16.gmra.mrb[0].mxu0 %v1712
    %v1821 = vpop.f32.mrb[0].mxu0
    %v1822 = vadd.f32 %v1737, %v1821
    %v1823 = vpop.f32.mrb[0].mxu0
    %v1824 = vpop.f32.mrb[0].mxu0
    %v1825 = vadd.f32 %v1737, %v1824
    %v1826 = vpop.f32.mrb[0].mxu0
    %1827 = vmatprep.mubr.bf16.mxu0 0
    %1828 = vmatmul.mubr.bf16.gmra.mrb[0].mxu0 %v1713
    %v1829 = vpop.f32.mrb[0].mxu0
    %v1830 = vadd.f32 %v1737, %v1829
    %v1831 = vpop.f32.mrb[0].mxu0
    %v1832 = vpop.f32.mrb[0].mxu0
    %v1833 = vadd.f32 %v1737, %v1832
    %v1834 = vpop.f32.mrb[0].mxu0
    %1835 = vmatprep.mubr.bf16.mxu0 0
    %1836 = vmatmul.mubr.bf16.gmra.mrb[0].mxu0 %v1714
    %v1837 = vpop.f32.mrb[0].mxu0
    %v1838 = vadd.f32 %v1737, %v1837
    %v1839 = vpop.f32.mrb[0].mxu0
    %v1840 = vpop.f32.mrb[0].mxu0
    %v1841 = vadd.f32 %v1737, %v1840
    %v1842 = vpop.f32.mrb[0].mxu0
    %1843 = vmatprep.mubr.bf16.mxu0 0
    %1844 = vmatmul.mubr.bf16.gmra.mrb[0].mxu0 %v1715
    %v1845 = vpop.f32.mrb[0].mxu0
    %v1846 = vadd.f32 %v1737, %v1845
    %v1847 = vpop.f32.mrb[0].mxu0
    %v1848 = vpop.f32.mrb[0].mxu0
    %v1849 = vadd.f32 %v1737, %v1848
    %v1850 = vpop.f32.mrb[0].mxu0
    %1851 = vdwg.mxu0
    %1852 = vst [vmem:[#allocation10] sm:$0xff] %v1822
    %1853 = vst [vmem:[#allocation10 + $0x8] sm:$0xff] %v1825
    %1854 = vst [vmem:[#allocation10 + $0x10] sm:$0xff] %v1830
    %1855 = vst [vmem:[#allocation10 + $0x18] sm:$0xff] %v1833
    %1856 = vst [vmem:[#allocation10 + $0x20] sm:$0xff] %v1838
    %1857 = vst [vmem:[#allocation10 + $0x28] sm:$0xff] %v1841
    %1858 = vst [vmem:[#allocation10 + $0x30] sm:$0xff] %v1846
    %1859 = vst [vmem:[#allocation10 + $0x38] sm:$0xff] %v1849
    // Predicated region
    $region42: #{tpu_custom_call.1} parent=1 // pred_check
      _
    $region43: #{tpu_custom_call.1} parent=1 // pred_check_branch
      %1861 = sbr.rel (0) target = $region45
    $region44: #{tpu_custom_call.1} parent=1 // pred_region
      %s1863 = ssub.s32 1024, 1024
      %1864 = vsyncadd [#allocation6], %s1863
      %s1865 = sshll.u32 [#allocation10], 4
      %s1866 = int_to_ptr.vmem [resolvable:$true] %s1865
      %1871 = dma.vmem_to_hbm [thread:$0]  %s1866, 1024, %s7, [#allocation6], 128, 128, 8
    $region45: #{tpu_custom_call.1} parent=1 // pred_fallthru
      _
    // Predicated region
    $region46: #{tpu_custom_call.1} parent=1 // pred_check
      _
    $region47: #{tpu_custom_call.1} parent=1 // pred_check_branch
      %1873 = sbr.rel (0) target = $region49
    $region48: #{tpu_custom_call.1} parent=1 // pred_region
      %1874 = dma.done [#allocation6], 1024
    $region49: #{tpu_custom_call.1} parent=1 // pred_fallthru
      _
    %1875 = vsyncpa [#allocation5], 1
    %1876 = vsyncpa [#allocation8], 1
    %1877 = vsyncpa [#allocation6], 1

</llo_original>
